<compile_context>
chip_gen: v7x
topology: tpu7x:2x2x1
jax: 0.10.0
libtpu: 0.0.40
codegen_flags: <defaults>
</compile_context>

<pallas_src>
import functools
import math

import numpy as np
import jax
import jax.numpy as jnp
from jax import lax
from jax.experimental import pallas as pl
from jax.experimental.pallas import tpu as pltpu

WINDOW_SIZE = 11
SIGMA = 1.5
C1 = (0.01 * 1.0) ** 2
C2 = (0.03 * 1.0) ** 2


def _round_up(x: int, m: int) -> int:
    return (x + m - 1) // m * m


def _gaussian_1d(window_size: int, sigma: float) -> np.ndarray:
    """1-D Gaussian taps, same construction/normalization as the PyTorch module."""
    g = np.array(
        [math.exp(-((x - window_size // 2) ** 2) / float(2 * sigma ** 2))
         for x in range(window_size)],
        dtype=np.float32,
    )
    return g / g.sum()


def _choose_planes(bc: int, h: int, w: int, pad: int, ws: int,
                   budget_bytes: int = 24 << 20) -> int:
    """Planes packed along the lane axis per grid step.

    Caps: (a) lane capacity floor(128/Wp); (b) BC//2 so the grid has >= 2 steps
    (keeps v7x's second TensorCore busy); (c) a rough VMEM working-set budget.
    Always returns a divisor of bc.
    """
    wp = w + 2 * pad
    hp8 = _round_up(h + 2 * pad, 8)
    lane_cap = max(1, 128 // wp)
    core_cap = bc // 2 if bc >= 2 else 1
    cap = max(1, min(lane_cap, core_cap))

    def need(npl: int) -> int:
        lext = _round_up(npl * wp + ws - 1, 128)
        inputs = 2 * 2 * npl * h * w * 4          # 2 inputs x 2 pipeline buffers
        scratch = 2 * hp8 * lext * 4              # padded packed slabs
        accs = 5 * hp8 * lext * 4 + 5 * h * lext * 4
        return inputs + scratch + accs

    divisors = [d for d in range(1, bc + 1) if bc % d == 0 and d <= cap]
    for d in sorted(divisors, reverse=True):
        if need(d) <= budget_bytes:
            return d
    return 1


def _ssim_kernel(x1_ref, x2_ref, out_ref, xbuf1, xbuf2, *,
                 H, W, NP, Wp, pad, Lacc, g_taps):
    """One grid step: NP planes, lane-packed, padded in-kernel, separable blur."""
    # ---- in-kernel zero padding + lane packing ------------------------------
    xbuf1[...] = jnp.zeros(xbuf1.shape, dtype=xbuf1.dtype)
    xbuf2[...] = jnp.zeros(xbuf2.shape, dtype=xbuf2.dtype)
    for p in range(NP):
        off = p * Wp + pad
        xbuf1[pl.ds(pad, H), pl.ds(off, W)] = x1_ref[p]
        xbuf2[pl.ds(pad, H), pl.ds(off, W)] = x2_ref[p]

    x1 = xbuf1[...]          # (Hp8, Lext) f32, zero-padded, planes along lanes
    x2 = xbuf2[...]

    def fma(acc, wgt, v):
        return wgt * v if acc is None else acc + wgt * v

    # ---- horizontal (lane-axis) 11-tap pass ---------------------------------
    # Only x1/x2 are lane-shifted per tap; products reuse the shifted slices.
    mu1h = mu2h = e11h = e22h = e12h = None
    for j, wgt in enumerate(g_taps):
        s1 = x1[:, j:j + Lacc]
        s2 = x2[:, j:j + Lacc]
        mu1h = fma(mu1h, wgt, s1)
        mu2h = fma(mu2h, wgt, s2)
        e11h = fma(e11h, wgt, s1 * s1)
        e22h = fma(e22h, wgt, s2 * s2)
        e12h = fma(e12h, wgt, s1 * s2)

    # ---- vertical (sublane-axis) 11-tap pass --------------------------------
    mu1 = mu2 = e11 = e22 = e12 = None
    for i, wgt in enumerate(g_taps):
        mu1 = fma(mu1, wgt, mu1h[i:i + H, :])
        mu2 = fma(mu2, wgt, mu2h[i:i + H, :])
        e11 = fma(e11, wgt, e11h[i:i + H, :])
        e22 = fma(e22, wgt, e22h[i:i + H, :])
        e12 = fma(e12, wgt, e12h[i:i + H, :])

    # ---- SSIM map -----------------------------------------------------------
    mu1_sq = mu1 * mu1
    mu2_sq = mu2 * mu2
    mu1_mu2 = mu1 * mu2
    sigma1_sq = e11 - mu1_sq
    sigma2_sq = e22 - mu2_sq
    sigma12 = e12 - mu1_mu2

    num = (2.0 * mu1_mu2 + C1) * (2.0 * sigma12 + C2)
    den = (mu1_sq + mu2_sq + C1) * (sigma1_sq + sigma2_sq + C2)
    ssim_map = num * pl.reciprocal(den, approx=True)   # EUP vrcp, ~2^-12 rel err

    # ---- mask invalid lanes (per-plane padding slots) and reduce ------------
    lane = lax.broadcasted_iota(jnp.int32, (H, Lacc), 1)
    mask = lane < W                                     # plane 0
    for p in range(1, NP):
        mask = jnp.logical_or(mask, (lane >= p * Wp) & (lane < p * Wp + W))

    total = jnp.sum(jnp.where(mask, ssim_map, 0.0))
    out_ref[...] = jnp.reshape(total, (1, 1, 1))


def ssim(img1: jax.Array, img2: jax.Array, window_size: int = WINDOW_SIZE) -> jax.Array:
    """SSIM matching the PyTorch module's forward(); inputs are NCHW."""
    B, C, H, W = img1.shape
    BC = B * C
    pad = window_size // 2
    Wp = W + 2 * pad
    Hp8 = _round_up(H + 2 * pad, 8)

    x1 = img1.reshape(BC, H, W).astype(jnp.float32)
    x2 = img2.reshape(BC, H, W).astype(jnp.float32)

    NP = _choose_planes(BC, H, W, pad, window_size)
    num_blocks = BC // NP
    Lacc = NP * Wp                                       # packed accumulator width
    Lext = _round_up(Lacc + window_size - 1, 128)        # packed padded slab width
    g_taps = tuple(float(v) for v in _gaussian_1d(window_size, SIGMA))

    kernel = functools.partial(_ssim_kernel, H=H, W=W, NP=NP, Wp=Wp,
                               pad=pad, Lacc=Lacc, g_taps=g_taps)

    partial_sums = pl.pallas_call(
        kernel,
        out_shape=jax.ShapeDtypeStruct((num_blocks, 1, 1), jnp.float32),
        grid_spec=pltpu.PrefetchScalarGridSpec(
            num_scalar_prefetch=0,
            grid=(num_blocks,),
            in_specs=[
                pl.BlockSpec((NP, H, W), lambda n: (n, 0, 0)),
                pl.BlockSpec((NP, H, W), lambda n: (n, 0, 0)),
            ],
            out_specs=pl.BlockSpec((1, 1, 1), lambda n: (n, 0, 0)),
            scratch_shapes=[
                pltpu.VMEM((Hp8, Lext), jnp.float32),
                pltpu.VMEM((Hp8, Lext), jnp.float32),
            ],
        ),
        compiler_params=pltpu.CompilerParams(
            dimension_semantics=("parallel",),
            vmem_limit_bytes=32 << 20,   # within every generation's scoped budget
        ),
    )(x1, x2)

    return jnp.sum(partial_sums) / float(BC * H * W)


def _ssim_reference(img1, img2, window_size=WINDOW_SIZE):
    """Pure-JAX reference (direct 121-tap 2-D convolution), for sanity checking."""
    B, C, H, W = img1.shape
    pad = window_size // 2
    g = _gaussian_1d(window_size, SIGMA)
    win2d = np.outer(g, g).astype(np.float32)

    x1 = jnp.pad(img1.reshape(B * C, H, W).astype(jnp.float32),
                 ((0, 0), (pad, pad), (pad, pad)))
    x2 = jnp.pad(img2.reshape(B * C, H, W).astype(jnp.float32),
                 ((0, 0), (pad, pad), (pad, pad)))

    def blur(x):
        out = jnp.zeros((B * C, H, W), jnp.float32)
        for i in range(window_size):
            for j in range(window_size):
                out = out + float(win2d[i, j]) * x[:, i:i + H, j:j + W]
        return out

    mu1, mu2 = blur(x1), blur(x2)
    mu1_sq, mu2_sq, mu1_mu2 = mu1 * mu1, mu2 * mu2, mu1 * mu2
    s1 = blur(x1 * x1) - mu1_sq
    s2 = blur(x2 * x2) - mu2_sq
    s12 = blur(x1 * x2) - mu1_mu2
    ssim_map = ((2 * mu1_mu2 + C1) * (2 * s12 + C2)) / (
        (mu1_sq + mu2_sq + C1) * (s1 + s2 + C2))
    return jnp.mean(ssim_map)


if __name__ == "__main__":
    key = jax.random.PRNGKey(0)
    k1, k2 = jax.random.split(key)
    B, C, H, W = 2, 4, 16, 16
    img1 = jax.random.uniform(k1, (B, C, H, W), dtype=jnp.float32)
    img2 = jax.random.uniform(k2, (B, C, H, W), dtype=jnp.float32)

    result = jax.block_until_ready(ssim(img1, img2))
    assert result.shape == () and bool(jnp.isfinite(result))

    ref = jax.block_until_ready(_ssim_reference(img1, img2))
    assert abs(float(result) - float(ref)) < 5e-4, (float(result), float(ref))

    print("KERNEL_OK")
</pallas_src>

<mosaic_0001>
module attributes {stable_mosaic.version = 11 : i64} {
  func.func @_ssim_kernel(%arg0: i32, %arg1: memref<4x16x16xf32, #tpu.memory_space<vmem>>, %arg2: memref<4x16x16xf32, #tpu.memory_space<vmem>>, %arg3: memref<1x1x1xf32, #tpu.memory_space<vmem>>, %arg4: memref<32x128xf32, #tpu.memory_space<vmem>>, %arg5: memref<32x128xf32, #tpu.memory_space<vmem>>) attributes {dimension_semantics = [#tpu.dimension_semantics<parallel>], iteration_bounds = array<i64: 2>, scalar_prefetch = 0 : i64, scratch_operands = 2 : i64, tpu.core_type = #tpu.core_type<tc>, window_params = [{transform_indices = @transform_0, window_bounds = array<i64: 4, 16, 16>}, {transform_indices = @transform_1, window_bounds = array<i64: 4, 16, 16>}, {transform_indices = @transform_2, window_bounds = array<i64: 1, 1, 1>}]} {
    %cst = arith.constant 0.000000e+00 : f32
    %0 = vector.broadcast %cst : f32 to vector<32x128xf32>
    %c0 = arith.constant 0 : index
    %c0_0 = arith.constant 0 : index
    %1 = vector.load %arg4[%c0, %c0_0] : memref<32x128xf32, #tpu.memory_space<vmem>>, vector<32x128xf32>
    tpu.vector_store %arg4[%c0, %c0_0], %0 {strides = array<i32>} : memref<32x128xf32, #tpu.memory_space<vmem>>, vector<32x128xf32>,
    %cst_1 = arith.constant 0.000000e+00 : f32
    %2 = vector.broadcast %cst_1 : f32 to vector<32x128xf32>
    %c0_2 = arith.constant 0 : index
    %c0_3 = arith.constant 0 : index
    %3 = vector.load %arg5[%c0_2, %c0_3] : memref<32x128xf32, #tpu.memory_space<vmem>>, vector<32x128xf32>
    tpu.vector_store %arg5[%c0_2, %c0_3], %2 {strides = array<i32>} : memref<32x128xf32, #tpu.memory_space<vmem>>, vector<32x128xf32>,
    %c0_4 = arith.constant 0 : index
    %c0_5 = arith.constant 0 : index
    %c0_6 = arith.constant 0 : index
    %4 = vector.load %arg1[%c0_4, %c0_5, %c0_6] : memref<4x16x16xf32, #tpu.memory_space<vmem>>, vector<1x16x16xf32>
    %5 = vector.shape_cast %4 : vector<1x16x16xf32> to vector<16x16xf32>
    %c5 = arith.constant 5 : index
    %c5_7 = arith.constant 5 : index
    %6 = vector.load %arg4[%c5, %c5_7] : memref<32x128xf32, #tpu.memory_space<vmem>>, vector<16x16xf32>
    tpu.vector_store %arg4[%c5, %c5_7], %5 {strides = array<i32>} : memref<32x128xf32, #tpu.memory_space<vmem>>, vector<16x16xf32>,
    %c0_8 = arith.constant 0 : index
    %c0_9 = arith.constant 0 : index
    %c0_10 = arith.constant 0 : index
    %7 = vector.load %arg2[%c0_8, %c0_9, %c0_10] : memref<4x16x16xf32, #tpu.memory_space<vmem>>, vector<1x16x16xf32>
    %8 = vector.shape_cast %7 : vector<1x16x16xf32> to vector<16x16xf32>
    %c5_11 = arith.constant 5 : index
    %c5_12 = arith.constant 5 : index
    %9 = vector.load %arg5[%c5_11, %c5_12] : memref<32x128xf32, #tpu.memory_space<vmem>>, vector<16x16xf32>
    tpu.vector_store %arg5[%c5_11, %c5_12], %8 {strides = array<i32>} : memref<32x128xf32, #tpu.memory_space<vmem>>, vector<16x16xf32>,
    %c1 = arith.constant 1 : index
    %c0_13 = arith.constant 0 : index
    %c0_14 = arith.constant 0 : index
    %10 = vector.load %arg1[%c1, %c0_13, %c0_14] : memref<4x16x16xf32, #tpu.memory_space<vmem>>, vector<1x16x16xf32>
    %11 = vector.shape_cast %10 : vector<1x16x16xf32> to vector<16x16xf32>
    %c5_15 = arith.constant 5 : index
    %c31 = arith.constant 31 : index
    %12 = vector.load %arg4[%c5_15, %c31] : memref<32x128xf32, #tpu.memory_space<vmem>>, vector<16x16xf32>
    tpu.vector_store %arg4[%c5_15, %c31], %11 {strides = array<i32>} : memref<32x128xf32, #tpu.memory_space<vmem>>, vector<16x16xf32>,
    %c1_16 = arith.constant 1 : index
    %c0_17 = arith.constant 0 : index
    %c0_18 = arith.constant 0 : index
    %13 = vector.load %arg2[%c1_16, %c0_17, %c0_18] : memref<4x16x16xf32, #tpu.memory_space<vmem>>, vector<1x16x16xf32>
    %14 = vector.shape_cast %13 : vector<1x16x16xf32> to vector<16x16xf32>
    %c5_19 = arith.constant 5 : index
    %c31_20 = arith.constant 31 : index
    %15 = vector.load %arg5[%c5_19, %c31_20] : memref<32x128xf32, #tpu.memory_space<vmem>>, vector<16x16xf32>
    tpu.vector_store %arg5[%c5_19, %c31_20], %14 {strides = array<i32>} : memref<32x128xf32, #tpu.memory_space<vmem>>, vector<16x16xf32>,
    %c2 = arith.constant 2 : index
    %c0_21 = arith.constant 0 : index
    %c0_22 = arith.constant 0 : index
    %16 = vector.load %arg1[%c2, %c0_21, %c0_22] : memref<4x16x16xf32, #tpu.memory_space<vmem>>, vector<1x16x16xf32>
    %17 = vector.shape_cast %16 : vector<1x16x16xf32> to vector<16x16xf32>
    %c5_23 = arith.constant 5 : index
    %c57 = arith.constant 57 : index
    %18 = vector.load %arg4[%c5_23, %c57] : memref<32x128xf32, #tpu.memory_space<vmem>>, vector<16x16xf32>
    tpu.vector_store %arg4[%c5_23, %c57], %17 {strides = array<i32>} : memref<32x128xf32, #tpu.memory_space<vmem>>, vector<16x16xf32>,
    %c2_24 = arith.constant 2 : index
    %c0_25 = arith.constant 0 : index
    %c0_26 = arith.constant 0 : index
    %19 = vector.load %arg2[%c2_24, %c0_25, %c0_26] : memref<4x16x16xf32, #tpu.memory_space<vmem>>, vector<1x16x16xf32>
    %20 = vector.shape_cast %19 : vector<1x16x16xf32> to vector<16x16xf32>
    %c5_27 = arith.constant 5 : index
    %c57_28 = arith.constant 57 : index
    %21 = vector.load %arg5[%c5_27, %c57_28] : memref<32x128xf32, #tpu.memory_space<vmem>>, vector<16x16xf32>
    tpu.vector_store %arg5[%c5_27, %c57_28], %20 {strides = array<i32>} : memref<32x128xf32, #tpu.memory_space<vmem>>, vector<16x16xf32>,
    %c3 = arith.constant 3 : index
    %c0_29 = arith.constant 0 : index
    %c0_30 = arith.constant 0 : index
    %22 = vector.load %arg1[%c3, %c0_29, %c0_30] : memref<4x16x16xf32, #tpu.memory_space<vmem>>, vector<1x16x16xf32>
    %23 = vector.shape_cast %22 : vector<1x16x16xf32> to vector<16x16xf32>
    %c5_31 = arith.constant 5 : index
    %c83 = arith.constant 83 : index
    %24 = vector.load %arg4[%c5_31, %c83] : memref<32x128xf32, #tpu.memory_space<vmem>>, vector<16x16xf32>
    tpu.vector_store %arg4[%c5_31, %c83], %23 {strides = array<i32>} : memref<32x128xf32, #tpu.memory_space<vmem>>, vector<16x16xf32>,
    %c3_32 = arith.constant 3 : index
    %c0_33 = arith.constant 0 : index
    %c0_34 = arith.constant 0 : index
    %25 = vector.load %arg2[%c3_32, %c0_33, %c0_34] : memref<4x16x16xf32, #tpu.memory_space<vmem>>, vector<1x16x16xf32>
    %26 = vector.shape_cast %25 : vector<1x16x16xf32> to vector<16x16xf32>
    %c5_35 = arith.constant 5 : index
    %c83_36 = arith.constant 83 : index
    %27 = vector.load %arg5[%c5_35, %c83_36] : memref<32x128xf32, #tpu.memory_space<vmem>>, vector<16x16xf32>
    tpu.vector_store %arg5[%c5_35, %c83_36], %26 {strides = array<i32>} : memref<32x128xf32, #tpu.memory_space<vmem>>, vector<16x16xf32>,
    %c0_37 = arith.constant 0 : index
    %c0_38 = arith.constant 0 : index
    %28 = vector.load %arg4[%c0_37, %c0_38] : memref<32x128xf32, #tpu.memory_space<vmem>>, vector<32x128xf32>
    %c0_39 = arith.constant 0 : index
    %c0_40 = arith.constant 0 : index
    %29 = vector.load %arg5[%c0_39, %c0_40] : memref<32x128xf32, #tpu.memory_space<vmem>>, vector<32x128xf32>
    %30 = vector.extract_strided_slice %28 {offsets = [0, 0], sizes = [32, 104], strides = [1, 1]} : vector<32x128xf32> to vector<32x104xf32>
    %31 = vector.extract_strided_slice %29 {offsets = [0, 0], sizes = [32, 104], strides = [1, 1]} : vector<32x128xf32> to vector<32x104xf32>
    %cst_41 = arith.constant 0.00102838024 : f32
    %32 = vector.broadcast %cst_41 : f32 to vector<32x104xf32>
    %33 = arith.mulf %32, %30 : vector<32x104xf32>
    %cst_42 = arith.constant 0.00102838024 : f32
    %34 = vector.broadcast %cst_42 : f32 to vector<32x104xf32>
    %35 = arith.mulf %34, %31 : vector<32x104xf32>
    %36 = arith.mulf %30, %30 : vector<32x104xf32>
    %cst_43 = arith.constant 0.00102838024 : f32
    %37 = vector.broadcast %cst_43 : f32 to vector<32x104xf32>
    %38 = arith.mulf %37, %36 : vector<32x104xf32>
    %39 = arith.mulf %31, %31 : vector<32x104xf32>
    %cst_44 = arith.constant 0.00102838024 : f32
    %40 = vector.broadcast %cst_44 : f32 to vector<32x104xf32>
    %41 = arith.mulf %40, %39 : vector<32x104xf32>
    %42 = arith.mulf %30, %31 : vector<32x104xf32>
    %cst_45 = arith.constant 0.00102838024 : f32
    %43 = vector.broadcast %cst_45 : f32 to vector<32x104xf32>
    %44 = arith.mulf %43, %42 : vector<32x104xf32>
    %45 = vector.extract_strided_slice %28 {offsets = [0, 1], sizes = [32, 104], strides = [1, 1]} : vector<32x128xf32> to vector<32x104xf32>
    %46 = vector.extract_strided_slice %29 {offsets = [0, 1], sizes = [32, 104], strides = [1, 1]} : vector<32x128xf32> to vector<32x104xf32>
    %cst_46 = arith.constant 0.00759875868 : f32
    %47 = vector.broadcast %cst_46 : f32 to vector<32x104xf32>
    %48 = arith.mulf %47, %45 : vector<32x104xf32>
    %49 = arith.addf %33, %48 : vector<32x104xf32>
    %cst_47 = arith.constant 0.00759875868 : f32
    %50 = vector.broadcast %cst_47 : f32 to vector<32x104xf32>
    %51 = arith.mulf %50, %46 : vector<32x104xf32>
    %52 = arith.addf %35, %51 : vector<32x104xf32>
    %53 = arith.mulf %45, %45 : vector<32x104xf32>
    %cst_48 = arith.constant 0.00759875868 : f32
    %54 = vector.broadcast %cst_48 : f32 to vector<32x104xf32>
    %55 = arith.mulf %54, %53 : vector<32x104xf32>
    %56 = arith.addf %38, %55 : vector<32x104xf32>
    %57 = arith.mulf %46, %46 : vector<32x104xf32>
    %cst_49 = arith.constant 0.00759875868 : f32
    %58 = vector.broadcast %cst_49 : f32 to vector<32x104xf32>
    %59 = arith.mulf %58, %57 : vector<32x104xf32>
    %60 = arith.addf %41, %59 : vector<32x104xf32>
    %61 = arith.mulf %45, %46 : vector<32x104xf32>
    %cst_50 = arith.constant 0.00759875868 : f32
    %62 = vector.broadcast %cst_50 : f32 to vector<32x104xf32>
    %63 = arith.mulf %62, %61 : vector<32x104xf32>
    %64 = arith.addf %44, %63 : vector<32x104xf32>
    %65 = vector.extract_strided_slice %28 {offsets = [0, 2], sizes = [32, 104], strides = [1, 1]} : vector<32x128xf32> to vector<32x104xf32>
    %66 = vector.extract_strided_slice %29 {offsets = [0, 2], sizes = [32, 104], strides = [1, 1]} : vector<32x128xf32> to vector<32x104xf32>
    %cst_51 = arith.constant 0.0360007733 : f32
    %67 = vector.broadcast %cst_51 : f32 to vector<32x104xf32>
    %68 = arith.mulf %67, %65 : vector<32x104xf32>
    %69 = arith.addf %49, %68 : vector<32x104xf32>
    %cst_52 = arith.constant 0.0360007733 : f32
    %70 = vector.broadcast %cst_52 : f32 to vector<32x104xf32>
    %71 = arith.mulf %70, %66 : vector<32x104xf32>
    %72 = arith.addf %52, %71 : vector<32x104xf32>
    %73 = arith.mulf %65, %65 : vector<32x104xf32>
    %cst_53 = arith.constant 0.0360007733 : f32
    %74 = vector.broadcast %cst_53 : f32 to vector<32x104xf32>
    %75 = arith.mulf %74, %73 : vector<32x104xf32>
    %76 = arith.addf %56, %75 : vector<32x104xf32>
    %77 = arith.mulf %66, %66 : vector<32x104xf32>
    %cst_54 = arith.constant 0.0360007733 : f32
    %78 = vector.broadcast %cst_54 : f32 to vector<32x104xf32>
    %79 = arith.mulf %78, %77 : vector<32x104xf32>
    %80 = arith.addf %60, %79 : vector<32x104xf32>
    %81 = arith.mulf %65, %66 : vector<32x104xf32>
    %cst_55 = arith.constant 0.0360007733 : f32
    %82 = vector.broadcast %cst_55 : f32 to vector<32x104xf32>
    %83 = arith.mulf %82, %81 : vector<32x104xf32>
    %84 = arith.addf %64, %83 : vector<32x104xf32>
    %85 = vector.extract_strided_slice %28 {offsets = [0, 3], sizes = [32, 104], strides = [1, 1]} : vector<32x128xf32> to vector<32x104xf32>
    %86 = vector.extract_strided_slice %29 {offsets = [0, 3], sizes = [32, 104], strides = [1, 1]} : vector<32x128xf32> to vector<32x104xf32>
    %cst_56 = arith.constant 0.109360695 : f32
    %87 = vector.broadcast %cst_56 : f32 to vector<32x104xf32>
    %88 = arith.mulf %87, %85 : vector<32x104xf32>
    %89 = arith.addf %69, %88 : vector<32x104xf32>
    %cst_57 = arith.constant 0.109360695 : f32
    %90 = vector.broadcast %cst_57 : f32 to vector<32x104xf32>
    %91 = arith.mulf %90, %86 : vector<32x104xf32>
    %92 = arith.addf %72, %91 : vector<32x104xf32>
    %93 = arith.mulf %85, %85 : vector<32x104xf32>
    %cst_58 = arith.constant 0.109360695 : f32
    %94 = vector.broadcast %cst_58 : f32 to vector<32x104xf32>
    %95 = arith.mulf %94, %93 : vector<32x104xf32>
    %96 = arith.addf %76, %95 : vector<32x104xf32>
    %97 = arith.mulf %86, %86 : vector<32x104xf32>
    %cst_59 = arith.constant 0.109360695 : f32
    %98 = vector.broadcast %cst_59 : f32 to vector<32x104xf32>
    %99 = arith.mulf %98, %97 : vector<32x104xf32>
    %100 = arith.addf %80, %99 : vector<32x104xf32>
    %101 = arith.mulf %85, %86 : vector<32x104xf32>
    %cst_60 = arith.constant 0.109360695 : f32
    %102 = vector.broadcast %cst_60 : f32 to vector<32x104xf32>
    %103 = arith.mulf %102, %101 : vector<32x104xf32>
    %104 = arith.addf %84, %103 : vector<32x104xf32>
    %105 = vector.extract_strided_slice %28 {offsets = [0, 4], sizes = [32, 104], strides = [1, 1]} : vector<32x128xf32> to vector<32x104xf32>
    %106 = vector.extract_strided_slice %29 {offsets = [0, 4], sizes = [32, 104], strides = [1, 1]} : vector<32x128xf32> to vector<32x104xf32>
    %cst_61 = arith.constant 0.213005543 : f32
    %107 = vector.broadcast %cst_61 : f32 to vector<32x104xf32>
    %108 = arith.mulf %107, %105 : vector<32x104xf32>
    %109 = arith.addf %89, %108 : vector<32x104xf32>
    %cst_62 = arith.constant 0.213005543 : f32
    %110 = vector.broadcast %cst_62 : f32 to vector<32x104xf32>
    %111 = arith.mulf %110, %106 : vector<32x104xf32>
    %112 = arith.addf %92, %111 : vector<32x104xf32>
    %113 = arith.mulf %105, %105 : vector<32x104xf32>
    %cst_63 = arith.constant 0.213005543 : f32
    %114 = vector.broadcast %cst_63 : f32 to vector<32x104xf32>
    %115 = arith.mulf %114, %113 : vector<32x104xf32>
    %116 = arith.addf %96, %115 : vector<32x104xf32>
    %117 = arith.mulf %106, %106 : vector<32x104xf32>
    %cst_64 = arith.constant 0.213005543 : f32
    %118 = vector.broadcast %cst_64 : f32 to vector<32x104xf32>
    %119 = arith.mulf %118, %117 : vector<32x104xf32>
    %120 = arith.addf %100, %119 : vector<32x104xf32>
    %121 = arith.mulf %105, %106 : vector<32x104xf32>
    %cst_65 = arith.constant 0.213005543 : f32
    %122 = vector.broadcast %cst_65 : f32 to vector<32x104xf32>
    %123 = arith.mulf %122, %121 : vector<32x104xf32>
    %124 = arith.addf %104, %123 : vector<32x104xf32>
    %125 = vector.extract_strided_slice %28 {offsets = [0, 5], sizes = [32, 104], strides = [1, 1]} : vector<32x128xf32> to vector<32x104xf32>
    %126 = vector.extract_strided_slice %29 {offsets = [0, 5], sizes = [32, 104], strides = [1, 1]} : vector<32x128xf32> to vector<32x104xf32>
    %cst_66 = arith.constant 0.266011745 : f32
    %127 = vector.broadcast %cst_66 : f32 to vector<32x104xf32>
    %128 = arith.mulf %127, %125 : vector<32x104xf32>
    %129 = arith.addf %109, %128 : vector<32x104xf32>
    %cst_67 = arith.constant 0.266011745 : f32
    %130 = vector.broadcast %cst_67 : f32 to vector<32x104xf32>
    %131 = arith.mulf %130, %126 : vector<32x104xf32>
    %132 = arith.addf %112, %131 : vector<32x104xf32>
    %133 = arith.mulf %125, %125 : vector<32x104xf32>
    %cst_68 = arith.constant 0.266011745 : f32
    %134 = vector.broadcast %cst_68 : f32 to vector<32x104xf32>
    %135 = arith.mulf %134, %133 : vector<32x104xf32>
    %136 = arith.addf %116, %135 : vector<32x104xf32>
    %137 = arith.mulf %126, %126 : vector<32x104xf32>
    %cst_69 = arith.constant 0.266011745 : f32
    %138 = vector.broadcast %cst_69 : f32 to vector<32x104xf32>
    %139 = arith.mulf %138, %137 : vector<32x104xf32>
    %140 = arith.addf %120, %139 : vector<32x104xf32>
    %141 = arith.mulf %125, %126 : vector<32x104xf32>
    %cst_70 = arith.constant 0.266011745 : f32
    %142 = vector.broadcast %cst_70 : f32 to vector<32x104xf32>
    %143 = arith.mulf %142, %141 : vector<32x104xf32>
    %144 = arith.addf %124, %143 : vector<32x104xf32>
    %145 = vector.extract_strided_slice %28 {offsets = [0, 6], sizes = [32, 104], strides = [1, 1]} : vector<32x128xf32> to vector<32x104xf32>
    %146 = vector.extract_strided_slice %29 {offsets = [0, 6], sizes = [32, 104], strides = [1, 1]} : vector<32x128xf32> to vector<32x104xf32>
    %cst_71 = arith.constant 0.213005543 : f32
    %147 = vector.broadcast %cst_71 : f32 to vector<32x104xf32>
    %148 = arith.mulf %147, %145 : vector<32x104xf32>
    %149 = arith.addf %129, %148 : vector<32x104xf32>
    %cst_72 = arith.constant 0.213005543 : f32
    %150 = vector.broadcast %cst_72 : f32 to vector<32x104xf32>
    %151 = arith.mulf %150, %146 : vector<32x104xf32>
    %152 = arith.addf %132, %151 : vector<32x104xf32>
    %153 = arith.mulf %145, %145 : vector<32x104xf32>
    %cst_73 = arith.constant 0.213005543 : f32
    %154 = vector.broadcast %cst_73 : f32 to vector<32x104xf32>
    %155 = arith.mulf %154, %153 : vector<32x104xf32>
    %156 = arith.addf %136, %155 : vector<32x104xf32>
    %157 = arith.mulf %146, %146 : vector<32x104xf32>
    %cst_74 = arith.constant 0.213005543 : f32
    %158 = vector.broadcast %cst_74 : f32 to vector<32x104xf32>
    %159 = arith.mulf %158, %157 : vector<32x104xf32>
    %160 = arith.addf %140, %159 : vector<32x104xf32>
    %161 = arith.mulf %145, %146 : vector<32x104xf32>
    %cst_75 = arith.constant 0.213005543 : f32
    %162 = vector.broadcast %cst_75 : f32 to vector<32x104xf32>
    %163 = arith.mulf %162, %161 : vector<32x104xf32>
    %164 = arith.addf %144, %163 : vector<32x104xf32>
    %165 = vector.extract_strided_slice %28 {offsets = [0, 7], sizes = [32, 104], strides = [1, 1]} : vector<32x128xf32> to vector<32x104xf32>
    %166 = vector.extract_strided_slice %29 {offsets = [0, 7], sizes = [32, 104], strides = [1, 1]} : vector<32x128xf32> to vector<32x104xf32>
    %cst_76 = arith.constant 0.109360695 : f32
    %167 = vector.broadcast %cst_76 : f32 to vector<32x104xf32>
    %168 = arith.mulf %167, %165 : vector<32x104xf32>
    %169 = arith.addf %149, %168 : vector<32x104xf32>
    %cst_77 = arith.constant 0.109360695 : f32
    %170 = vector.broadcast %cst_77 : f32 to vector<32x104xf32>
    %171 = arith.mulf %170, %166 : vector<32x104xf32>
    %172 = arith.addf %152, %171 : vector<32x104xf32>
    %173 = arith.mulf %165, %165 : vector<32x104xf32>
    %cst_78 = arith.constant 0.109360695 : f32
    %174 = vector.broadcast %cst_78 : f32 to vector<32x104xf32>
    %175 = arith.mulf %174, %173 : vector<32x104xf32>
    %176 = arith.addf %156, %175 : vector<32x104xf32>
    %177 = arith.mulf %166, %166 : vector<32x104xf32>
    %cst_79 = arith.constant 0.109360695 : f32
    %178 = vector.broadcast %cst_79 : f32 to vector<32x104xf32>
    %179 = arith.mulf %178, %177 : vector<32x104xf32>
    %180 = arith.addf %160, %179 : vector<32x104xf32>
    %181 = arith.mulf %165, %166 : vector<32x104xf32>
    %cst_80 = arith.constant 0.109360695 : f32
    %182 = vector.broadcast %cst_80 : f32 to vector<32x104xf32>
    %183 = arith.mulf %182, %181 : vector<32x104xf32>
    %184 = arith.addf %164, %183 : vector<32x104xf32>
    %185 = vector.extract_strided_slice %28 {offsets = [0, 8], sizes = [32, 104], strides = [1, 1]} : vector<32x128xf32> to vector<32x104xf32>
    %186 = vector.extract_strided_slice %29 {offsets = [0, 8], sizes = [32, 104], strides = [1, 1]} : vector<32x128xf32> to vector<32x104xf32>
    %cst_81 = arith.constant 0.0360007733 : f32
    %187 = vector.broadcast %cst_81 : f32 to vector<32x104xf32>
    %188 = arith.mulf %187, %185 : vector<32x104xf32>
    %189 = arith.addf %169, %188 : vector<32x104xf32>
    %cst_82 = arith.constant 0.0360007733 : f32
    %190 = vector.broadcast %cst_82 : f32 to vector<32x104xf32>
    %191 = arith.mulf %190, %186 : vector<32x104xf32>
    %192 = arith.addf %172, %191 : vector<32x104xf32>
    %193 = arith.mulf %185, %185 : vector<32x104xf32>
    %cst_83 = arith.constant 0.0360007733 : f32
    %194 = vector.broadcast %cst_83 : f32 to vector<32x104xf32>
    %195 = arith.mulf %194, %193 : vector<32x104xf32>
    %196 = arith.addf %176, %195 : vector<32x104xf32>
    %197 = arith.mulf %186, %186 : vector<32x104xf32>
    %cst_84 = arith.constant 0.0360007733 : f32
    %198 = vector.broadcast %cst_84 : f32 to vector<32x104xf32>
    %199 = arith.mulf %198, %197 : vector<32x104xf32>
    %200 = arith.addf %180, %199 : vector<32x104xf32>
    %201 = arith.mulf %185, %186 : vector<32x104xf32>
    %cst_85 = arith.constant 0.0360007733 : f32
    %202 = vector.broadcast %cst_85 : f32 to vector<32x104xf32>
    %203 = arith.mulf %202, %201 : vector<32x104xf32>
    %204 = arith.addf %184, %203 : vector<32x104xf32>
    %205 = vector.extract_strided_slice %28 {offsets = [0, 9], sizes = [32, 104], strides = [1, 1]} : vector<32x128xf32> to vector<32x104xf32>
    %206 = vector.extract_strided_slice %29 {offsets = [0, 9], sizes = [32, 104], strides = [1, 1]} : vector<32x128xf32> to vector<32x104xf32>
    %cst_86 = arith.constant 0.00759875868 : f32
    %207 = vector.broadcast %cst_86 : f32 to vector<32x104xf32>
    %208 = arith.mulf %207, %205 : vector<32x104xf32>
    %209 = arith.addf %189, %208 : vector<32x104xf32>
    %cst_87 = arith.constant 0.00759875868 : f32
    %210 = vector.broadcast %cst_87 : f32 to vector<32x104xf32>
    %211 = arith.mulf %210, %206 : vector<32x104xf32>
    %212 = arith.addf %192, %211 : vector<32x104xf32>
    %213 = arith.mulf %205, %205 : vector<32x104xf32>
    %cst_88 = arith.constant 0.00759875868 : f32
    %214 = vector.broadcast %cst_88 : f32 to vector<32x104xf32>
    %215 = arith.mulf %214, %213 : vector<32x104xf32>
    %216 = arith.addf %196, %215 : vector<32x104xf32>
    %217 = arith.mulf %206, %206 : vector<32x104xf32>
    %cst_89 = arith.constant 0.00759875868 : f32
    %218 = vector.broadcast %cst_89 : f32 to vector<32x104xf32>
    %219 = arith.mulf %218, %217 : vector<32x104xf32>
    %220 = arith.addf %200, %219 : vector<32x104xf32>
    %221 = arith.mulf %205, %206 : vector<32x104xf32>
    %cst_90 = arith.constant 0.00759875868 : f32
    %222 = vector.broadcast %cst_90 : f32 to vector<32x104xf32>
    %223 = arith.mulf %222, %221 : vector<32x104xf32>
    %224 = arith.addf %204, %223 : vector<32x104xf32>
    %225 = vector.extract_strided_slice %28 {offsets = [0, 10], sizes = [32, 104], strides = [1, 1]} : vector<32x128xf32> to vector<32x104xf32>
    %226 = vector.extract_strided_slice %29 {offsets = [0, 10], sizes = [32, 104], strides = [1, 1]} : vector<32x128xf32> to vector<32x104xf32>
    %cst_91 = arith.constant 0.00102838024 : f32
    %227 = vector.broadcast %cst_91 : f32 to vector<32x104xf32>
    %228 = arith.mulf %227, %225 : vector<32x104xf32>
    %229 = arith.addf %209, %228 : vector<32x104xf32>
    %cst_92 = arith.constant 0.00102838024 : f32
    %230 = vector.broadcast %cst_92 : f32 to vector<32x104xf32>
    %231 = arith.mulf %230, %226 : vector<32x104xf32>
    %232 = arith.addf %212, %231 : vector<32x104xf32>
    %233 = arith.mulf %225, %225 : vector<32x104xf32>
    %cst_93 = arith.constant 0.00102838024 : f32
    %234 = vector.broadcast %cst_93 : f32 to vector<32x104xf32>
    %235 = arith.mulf %234, %233 : vector<32x104xf32>
    %236 = arith.addf %216, %235 : vector<32x104xf32>
    %237 = arith.mulf %226, %226 : vector<32x104xf32>
    %cst_94 = arith.constant 0.00102838024 : f32
    %238 = vector.broadcast %cst_94 : f32 to vector<32x104xf32>
    %239 = arith.mulf %238, %237 : vector<32x104xf32>
    %240 = arith.addf %220, %239 : vector<32x104xf32>
    %241 = arith.mulf %225, %226 : vector<32x104xf32>
    %cst_95 = arith.constant 0.00102838024 : f32
    %242 = vector.broadcast %cst_95 : f32 to vector<32x104xf32>
    %243 = arith.mulf %242, %241 : vector<32x104xf32>
    %244 = arith.addf %224, %243 : vector<32x104xf32>
    %245 = vector.extract_strided_slice %229 {offsets = [0, 0], sizes = [16, 104], strides = [1, 1]} : vector<32x104xf32> to vector<16x104xf32>
    %cst_96 = arith.constant 0.00102838024 : f32
    %246 = vector.broadcast %cst_96 : f32 to vector<16x104xf32>
    %247 = arith.mulf %246, %245 : vector<16x104xf32>
    %248 = vector.extract_strided_slice %232 {offsets = [0, 0], sizes = [16, 104], strides = [1, 1]} : vector<32x104xf32> to vector<16x104xf32>
    %cst_97 = arith.constant 0.00102838024 : f32
    %249 = vector.broadcast %cst_97 : f32 to vector<16x104xf32>
    %250 = arith.mulf %249, %248 : vector<16x104xf32>
    %251 = vector.extract_strided_slice %236 {offsets = [0, 0], sizes = [16, 104], strides = [1, 1]} : vector<32x104xf32> to vector<16x104xf32>
    %cst_98 = arith.constant 0.00102838024 : f32
    %252 = vector.broadcast %cst_98 : f32 to vector<16x104xf32>
    %253 = arith.mulf %252, %251 : vector<16x104xf32>
    %254 = vector.extract_strided_slice %240 {offsets = [0, 0], sizes = [16, 104], strides = [1, 1]} : vector<32x104xf32> to vector<16x104xf32>
    %cst_99 = arith.constant 0.00102838024 : f32
    %255 = vector.broadcast %cst_99 : f32 to vector<16x104xf32>
    %256 = arith.mulf %255, %254 : vector<16x104xf32>
    %257 = vector.extract_strided_slice %244 {offsets = [0, 0], sizes = [16, 104], strides = [1, 1]} : vector<32x104xf32> to vector<16x104xf32>
    %cst_100 = arith.constant 0.00102838024 : f32
    %258 = vector.broadcast %cst_100 : f32 to vector<16x104xf32>
    %259 = arith.mulf %258, %257 : vector<16x104xf32>
    %260 = vector.extract_strided_slice %229 {offsets = [1, 0], sizes = [16, 104], strides = [1, 1]} : vector<32x104xf32> to vector<16x104xf32>
    %cst_101 = arith.constant 0.00759875868 : f32
    %261 = vector.broadcast %cst_101 : f32 to vector<16x104xf32>
    %262 = arith.mulf %261, %260 : vector<16x104xf32>
    %263 = arith.addf %247, %262 : vector<16x104xf32>
    %264 = vector.extract_strided_slice %232 {offsets = [1, 0], sizes = [16, 104], strides = [1, 1]} : vector<32x104xf32> to vector<16x104xf32>
    %cst_102 = arith.constant 0.00759875868 : f32
    %265 = vector.broadcast %cst_102 : f32 to vector<16x104xf32>
    %266 = arith.mulf %265, %264 : vector<16x104xf32>
    %267 = arith.addf %250, %266 : vector<16x104xf32>
    %268 = vector.extract_strided_slice %236 {offsets = [1, 0], sizes = [16, 104], strides = [1, 1]} : vector<32x104xf32> to vector<16x104xf32>
    %cst_103 = arith.constant 0.00759875868 : f32
    %269 = vector.broadcast %cst_103 : f32 to vector<16x104xf32>
    %270 = arith.mulf %269, %268 : vector<16x104xf32>
    %271 = arith.addf %253, %270 : vector<16x104xf32>
    %272 = vector.extract_strided_slice %240 {offsets = [1, 0], sizes = [16, 104], strides = [1, 1]} : vector<32x104xf32> to vector<16x104xf32>
    %cst_104 = arith.constant 0.00759875868 : f32
    %273 = vector.broadcast %cst_104 : f32 to vector<16x104xf32>
    %274 = arith.mulf %273, %272 : vector<16x104xf32>
    %275 = arith.addf %256, %274 : vector<16x104xf32>
    %276 = vector.extract_strided_slice %244 {offsets = [1, 0], sizes = [16, 104], strides = [1, 1]} : vector<32x104xf32> to vector<16x104xf32>
    %cst_105 = arith.constant 0.00759875868 : f32
    %277 = vector.broadcast %cst_105 : f32 to vector<16x104xf32>
    %278 = arith.mulf %277, %276 : vector<16x104xf32>
    %279 = arith.addf %259, %278 : vector<16x104xf32>
    %280 = vector.extract_strided_slice %229 {offsets = [2, 0], sizes = [16, 104], strides = [1, 1]} : vector<32x104xf32> to vector<16x104xf32>
    %cst_106 = arith.constant 0.0360007733 : f32
    %281 = vector.broadcast %cst_106 : f32 to vector<16x104xf32>
    %282 = arith.mulf %281, %280 : vector<16x104xf32>
    %283 = arith.addf %263, %282 : vector<16x104xf32>
    %284 = vector.extract_strided_slice %232 {offsets = [2, 0], sizes = [16, 104], strides = [1, 1]} : vector<32x104xf32> to vector<16x104xf32>
    %cst_107 = arith.constant 0.0360007733 : f32
    %285 = vector.broadcast %cst_107 : f32 to vector<16x104xf32>
    %286 = arith.mulf %285, %284 : vector<16x104xf32>
    %287 = arith.addf %267, %286 : vector<16x104xf32>
    %288 = vector.extract_strided_slice %236 {offsets = [2, 0], sizes = [16, 104], strides = [1, 1]} : vector<32x104xf32> to vector<16x104xf32>
    %cst_108 = arith.constant 0.0360007733 : f32
    %289 = vector.broadcast %cst_108 : f32 to vector<16x104xf32>
    %290 = arith.mulf %289, %288 : vector<16x104xf32>
    %291 = arith.addf %271, %290 : vector<16x104xf32>
    %292 = vector.extract_strided_slice %240 {offsets = [2, 0], sizes = [16, 104], strides = [1, 1]} : vector<32x104xf32> to vector<16x104xf32>
    %cst_109 = arith.constant 0.0360007733 : f32
    %293 = vector.broadcast %cst_109 : f32 to vector<16x104xf32>
    %294 = arith.mulf %293, %292 : vector<16x104xf32>
    %295 = arith.addf %275, %294 : vector<16x104xf32>
    %296 = vector.extract_strided_slice %244 {offsets = [2, 0], sizes = [16, 104], strides = [1, 1]} : vector<32x104xf32> to vector<16x104xf32>
    %cst_110 = arith.constant 0.0360007733 : f32
    %297 = vector.broadcast %cst_110 : f32 to vector<16x104xf32>
    %298 = arith.mulf %297, %296 : vector<16x104xf32>
    %299 = arith.addf %279, %298 : vector<16x104xf32>
    %300 = vector.extract_strided_slice %229 {offsets = [3, 0], sizes = [16, 104], strides = [1, 1]} : vector<32x104xf32> to vector<16x104xf32>
    %cst_111 = arith.constant 0.109360695 : f32
    %301 = vector.broadcast %cst_111 : f32 to vector<16x104xf32>
    %302 = arith.mulf %301, %300 : vector<16x104xf32>
    %303 = arith.addf %283, %302 : vector<16x104xf32>
    %304 = vector.extract_strided_slice %232 {offsets = [3, 0], sizes = [16, 104], strides = [1, 1]} : vector<32x104xf32> to vector<16x104xf32>
    %cst_112 = arith.constant 0.109360695 : f32
    %305 = vector.broadcast %cst_112 : f32 to vector<16x104xf32>
    %306 = arith.mulf %305, %304 : vector<16x104xf32>
    %307 = arith.addf %287, %306 : vector<16x104xf32>
    %308 = vector.extract_strided_slice %236 {offsets = [3, 0], sizes = [16, 104], strides = [1, 1]} : vector<32x104xf32> to vector<16x104xf32>
    %cst_113 = arith.constant 0.109360695 : f32
    %309 = vector.broadcast %cst_113 : f32 to vector<16x104xf32>
    %310 = arith.mulf %309, %308 : vector<16x104xf32>
    %311 = arith.addf %291, %310 : vector<16x104xf32>
    %312 = vector.extract_strided_slice %240 {offsets = [3, 0], sizes = [16, 104], strides = [1, 1]} : vector<32x104xf32> to vector<16x104xf32>
    %cst_114 = arith.constant 0.109360695 : f32
    %313 = vector.broadcast %cst_114 : f32 to vector<16x104xf32>
    %314 = arith.mulf %313, %312 : vector<16x104xf32>
    %315 = arith.addf %295, %314 : vector<16x104xf32>
    %316 = vector.extract_strided_slice %244 {offsets = [3, 0], sizes = [16, 104], strides = [1, 1]} : vector<32x104xf32> to vector<16x104xf32>
    %cst_115 = arith.constant 0.109360695 : f32
    %317 = vector.broadcast %cst_115 : f32 to vector<16x104xf32>
    %318 = arith.mulf %317, %316 : vector<16x104xf32>
    %319 = arith.addf %299, %318 : vector<16x104xf32>
    %320 = vector.extract_strided_slice %229 {offsets = [4, 0], sizes = [16, 104], strides = [1, 1]} : vector<32x104xf32> to vector<16x104xf32>
    %cst_116 = arith.constant 0.213005543 : f32
    %321 = vector.broadcast %cst_116 : f32 to vector<16x104xf32>
    %322 = arith.mulf %321, %320 : vector<16x104xf32>
    %323 = arith.addf %303, %322 : vector<16x104xf32>
    %324 = vector.extract_strided_slice %232 {offsets = [4, 0], sizes = [16, 104], strides = [1, 1]} : vector<32x104xf32> to vector<16x104xf32>
    %cst_117 = arith.constant 0.213005543 : f32
    %325 = vector.broadcast %cst_117 : f32 to vector<16x104xf32>
    %326 = arith.mulf %325, %324 : vector<16x104xf32>
    %327 = arith.addf %307, %326 : vector<16x104xf32>
    %328 = vector.extract_strided_slice %236 {offsets = [4, 0], sizes = [16, 104], strides = [1, 1]} : vector<32x104xf32> to vector<16x104xf32>
    %cst_118 = arith.constant 0.213005543 : f32
    %329 = vector.broadcast %cst_118 : f32 to vector<16x104xf32>
    %330 = arith.mulf %329, %328 : vector<16x104xf32>
    %331 = arith.addf %311, %330 : vector<16x104xf32>
    %332 = vector.extract_strided_slice %240 {offsets = [4, 0], sizes = [16, 104], strides = [1, 1]} : vector<32x104xf32> to vector<16x104xf32>
    %cst_119 = arith.constant 0.213005543 : f32
    %333 = vector.broadcast %cst_119 : f32 to vector<16x104xf32>
    %334 = arith.mulf %333, %332 : vector<16x104xf32>
    %335 = arith.addf %315, %334 : vector<16x104xf32>
    %336 = vector.extract_strided_slice %244 {offsets = [4, 0], sizes = [16, 104], strides = [1, 1]} : vector<32x104xf32> to vector<16x104xf32>
    %cst_120 = arith.constant 0.213005543 : f32
    %337 = vector.broadcast %cst_120 : f32 to vector<16x104xf32>
    %338 = arith.mulf %337, %336 : vector<16x104xf32>
    %339 = arith.addf %319, %338 : vector<16x104xf32>
    %340 = vector.extract_strided_slice %229 {offsets = [5, 0], sizes = [16, 104], strides = [1, 1]} : vector<32x104xf32> to vector<16x104xf32>
    %cst_121 = arith.constant 0.266011745 : f32
    %341 = vector.broadcast %cst_121 : f32 to vector<16x104xf32>
    %342 = arith.mulf %341, %340 : vector<16x104xf32>
    %343 = arith.addf %323, %342 : vector<16x104xf32>
    %344 = vector.extract_strided_slice %232 {offsets = [5, 0], sizes = [16, 104], strides = [1, 1]} : vector<32x104xf32> to vector<16x104xf32>
    %cst_122 = arith.constant 0.266011745 : f32
    %345 = vector.broadcast %cst_122 : f32 to vector<16x104xf32>
    %346 = arith.mulf %345, %344 : vector<16x104xf32>
    %347 = arith.addf %327, %346 : vector<16x104xf32>
    %348 = vector.extract_strided_slice %236 {offsets = [5, 0], sizes = [16, 104], strides = [1, 1]} : vector<32x104xf32> to vector<16x104xf32>
    %cst_123 = arith.constant 0.266011745 : f32
    %349 = vector.broadcast %cst_123 : f32 to vector<16x104xf32>
    %350 = arith.mulf %349, %348 : vector<16x104xf32>
    %351 = arith.addf %331, %350 : vector<16x104xf32>
    %352 = vector.extract_strided_slice %240 {offsets = [5, 0], sizes = [16, 104], strides = [1, 1]} : vector<32x104xf32> to vector<16x104xf32>
    %cst_124 = arith.constant 0.266011745 : f32
    %353 = vector.broadcast %cst_124 : f32 to vector<16x104xf32>
    %354 = arith.mulf %353, %352 : vector<16x104xf32>
    %355 = arith.addf %335, %354 : vector<16x104xf32>
    %356 = vector.extract_strided_slice %244 {offsets = [5, 0], sizes = [16, 104], strides = [1, 1]} : vector<32x104xf32> to vector<16x104xf32>
    %cst_125 = arith.constant 0.266011745 : f32
    %357 = vector.broadcast %cst_125 : f32 to vector<16x104xf32>
    %358 = arith.mulf %357, %356 : vector<16x104xf32>
    %359 = arith.addf %339, %358 : vector<16x104xf32>
    %360 = vector.extract_strided_slice %229 {offsets = [6, 0], sizes = [16, 104], strides = [1, 1]} : vector<32x104xf32> to vector<16x104xf32>
    %cst_126 = arith.constant 0.213005543 : f32
    %361 = vector.broadcast %cst_126 : f32 to vector<16x104xf32>
    %362 = arith.mulf %361, %360 : vector<16x104xf32>
    %363 = arith.addf %343, %362 : vector<16x104xf32>
    %364 = vector.extract_strided_slice %232 {offsets = [6, 0], sizes = [16, 104], strides = [1, 1]} : vector<32x104xf32> to vector<16x104xf32>
    %cst_127 = arith.constant 0.213005543 : f32
    %365 = vector.broadcast %cst_127 : f32 to vector<16x104xf32>
    %366 = arith.mulf %365, %364 : vector<16x104xf32>
    %367 = arith.addf %347, %366 : vector<16x104xf32>
    %368 = vector.extract_strided_slice %236 {offsets = [6, 0], sizes = [16, 104], strides = [1, 1]} : vector<32x104xf32> to vector<16x104xf32>
    %cst_128 = arith.constant 0.213005543 : f32
    %369 = vector.broadcast %cst_128 : f32 to vector<16x104xf32>
    %370 = arith.mulf %369, %368 : vector<16x104xf32>
    %371 = arith.addf %351, %370 : vector<16x104xf32>
    %372 = vector.extract_strided_slice %240 {offsets = [6, 0], sizes = [16, 104], strides = [1, 1]} : vector<32x104xf32> to vector<16x104xf32>
    %cst_129 = arith.constant 0.213005543 : f32
    %373 = vector.broadcast %cst_129 : f32 to vector<16x104xf32>
    %374 = arith.mulf %373, %372 : vector<16x104xf32>
    %375 = arith.addf %355, %374 : vector<16x104xf32>
    %376 = vector.extract_strided_slice %244 {offsets = [6, 0], sizes = [16, 104], strides = [1, 1]} : vector<32x104xf32> to vector<16x104xf32>
    %cst_130 = arith.constant 0.213005543 : f32
    %377 = vector.broadcast %cst_130 : f32 to vector<16x104xf32>
    %378 = arith.mulf %377, %376 : vector<16x104xf32>
    %379 = arith.addf %359, %378 : vector<16x104xf32>
    %380 = vector.extract_strided_slice %229 {offsets = [7, 0], sizes = [16, 104], strides = [1, 1]} : vector<32x104xf32> to vector<16x104xf32>
    %cst_131 = arith.constant 0.109360695 : f32
    %381 = vector.broadcast %cst_131 : f32 to vector<16x104xf32>
    %382 = arith.mulf %381, %380 : vector<16x104xf32>
    %383 = arith.addf %363, %382 : vector<16x104xf32>
    %384 = vector.extract_strided_slice %232 {offsets = [7, 0], sizes = [16, 104], strides = [1, 1]} : vector<32x104xf32> to vector<16x104xf32>
    %cst_132 = arith.constant 0.109360695 : f32
    %385 = vector.broadcast %cst_132 : f32 to vector<16x104xf32>
    %386 = arith.mulf %385, %384 : vector<16x104xf32>
    %387 = arith.addf %367, %386 : vector<16x104xf32>
    %388 = vector.extract_strided_slice %236 {offsets = [7, 0], sizes = [16, 104], strides = [1, 1]} : vector<32x104xf32> to vector<16x104xf32>
    %cst_133 = arith.constant 0.109360695 : f32
    %389 = vector.broadcast %cst_133 : f32 to vector<16x104xf32>
    %390 = arith.mulf %389, %388 : vector<16x104xf32>
    %391 = arith.addf %371, %390 : vector<16x104xf32>
    %392 = vector.extract_strided_slice %240 {offsets = [7, 0], sizes = [16, 104], strides = [1, 1]} : vector<32x104xf32> to vector<16x104xf32>
    %cst_134 = arith.constant 0.109360695 : f32
    %393 = vector.broadcast %cst_134 : f32 to vector<16x104xf32>
    %394 = arith.mulf %393, %392 : vector<16x104xf32>
    %395 = arith.addf %375, %394 : vector<16x104xf32>
    %396 = vector.extract_strided_slice %244 {offsets = [7, 0], sizes = [16, 104], strides = [1, 1]} : vector<32x104xf32> to vector<16x104xf32>
    %cst_135 = arith.constant 0.109360695 : f32
    %397 = vector.broadcast %cst_135 : f32 to vector<16x104xf32>
    %398 = arith.mulf %397, %396 : vector<16x104xf32>
    %399 = arith.addf %379, %398 : vector<16x104xf32>
    %400 = vector.extract_strided_slice %229 {offsets = [8, 0], sizes = [16, 104], strides = [1, 1]} : vector<32x104xf32> to vector<16x104xf32>
    %cst_136 = arith.constant 0.0360007733 : f32
    %401 = vector.broadcast %cst_136 : f32 to vector<16x104xf32>
    %402 = arith.mulf %401, %400 : vector<16x104xf32>
    %403 = arith.addf %383, %402 : vector<16x104xf32>
    %404 = vector.extract_strided_slice %232 {offsets = [8, 0], sizes = [16, 104], strides = [1, 1]} : vector<32x104xf32> to vector<16x104xf32>
    %cst_137 = arith.constant 0.0360007733 : f32
    %405 = vector.broadcast %cst_137 : f32 to vector<16x104xf32>
    %406 = arith.mulf %405, %404 : vector<16x104xf32>
    %407 = arith.addf %387, %406 : vector<16x104xf32>
    %408 = vector.extract_strided_slice %236 {offsets = [8, 0], sizes = [16, 104], strides = [1, 1]} : vector<32x104xf32> to vector<16x104xf32>
    %cst_138 = arith.constant 0.0360007733 : f32
    %409 = vector.broadcast %cst_138 : f32 to vector<16x104xf32>
    %410 = arith.mulf %409, %408 : vector<16x104xf32>
    %411 = arith.addf %391, %410 : vector<16x104xf32>
    %412 = vector.extract_strided_slice %240 {offsets = [8, 0], sizes = [16, 104], strides = [1, 1]} : vector<32x104xf32> to vector<16x104xf32>
    %cst_139 = arith.constant 0.0360007733 : f32
    %413 = vector.broadcast %cst_139 : f32 to vector<16x104xf32>
    %414 = arith.mulf %413, %412 : vector<16x104xf32>
    %415 = arith.addf %395, %414 : vector<16x104xf32>
    %416 = vector.extract_strided_slice %244 {offsets = [8, 0], sizes = [16, 104], strides = [1, 1]} : vector<32x104xf32> to vector<16x104xf32>
    %cst_140 = arith.constant 0.0360007733 : f32
    %417 = vector.broadcast %cst_140 : f32 to vector<16x104xf32>
    %418 = arith.mulf %417, %416 : vector<16x104xf32>
    %419 = arith.addf %399, %418 : vector<16x104xf32>
    %420 = vector.extract_strided_slice %229 {offsets = [9, 0], sizes = [16, 104], strides = [1, 1]} : vector<32x104xf32> to vector<16x104xf32>
    %cst_141 = arith.constant 0.00759875868 : f32
    %421 = vector.broadcast %cst_141 : f32 to vector<16x104xf32>
    %422 = arith.mulf %421, %420 : vector<16x104xf32>
    %423 = arith.addf %403, %422 : vector<16x104xf32>
    %424 = vector.extract_strided_slice %232 {offsets = [9, 0], sizes = [16, 104], strides = [1, 1]} : vector<32x104xf32> to vector<16x104xf32>
    %cst_142 = arith.constant 0.00759875868 : f32
    %425 = vector.broadcast %cst_142 : f32 to vector<16x104xf32>
    %426 = arith.mulf %425, %424 : vector<16x104xf32>
    %427 = arith.addf %407, %426 : vector<16x104xf32>
    %428 = vector.extract_strided_slice %236 {offsets = [9, 0], sizes = [16, 104], strides = [1, 1]} : vector<32x104xf32> to vector<16x104xf32>
    %cst_143 = arith.constant 0.00759875868 : f32
    %429 = vector.broadcast %cst_143 : f32 to vector<16x104xf32>
    %430 = arith.mulf %429, %428 : vector<16x104xf32>
    %431 = arith.addf %411, %430 : vector<16x104xf32>
    %432 = vector.extract_strided_slice %240 {offsets = [9, 0], sizes = [16, 104], strides = [1, 1]} : vector<32x104xf32> to vector<16x104xf32>
    %cst_144 = arith.constant 0.00759875868 : f32
    %433 = vector.broadcast %cst_144 : f32 to vector<16x104xf32>
    %434 = arith.mulf %433, %432 : vector<16x104xf32>
    %435 = arith.addf %415, %434 : vector<16x104xf32>
    %436 = vector.extract_strided_slice %244 {offsets = [9, 0], sizes = [16, 104], strides = [1, 1]} : vector<32x104xf32> to vector<16x104xf32>
    %cst_145 = arith.constant 0.00759875868 : f32
    %437 = vector.broadcast %cst_145 : f32 to vector<16x104xf32>
    %438 = arith.mulf %437, %436 : vector<16x104xf32>
    %439 = arith.addf %419, %438 : vector<16x104xf32>
    %440 = vector.extract_strided_slice %229 {offsets = [10, 0], sizes = [16, 104], strides = [1, 1]} : vector<32x104xf32> to vector<16x104xf32>
    %cst_146 = arith.constant 0.00102838024 : f32
    %441 = vector.broadcast %cst_146 : f32 to vector<16x104xf32>
    %442 = arith.mulf %441, %440 : vector<16x104xf32>
    %443 = arith.addf %423, %442 : vector<16x104xf32>
    %444 = vector.extract_strided_slice %232 {offsets = [10, 0], sizes = [16, 104], strides = [1, 1]} : vector<32x104xf32> to vector<16x104xf32>
    %cst_147 = arith.constant 0.00102838024 : f32
    %445 = vector.broadcast %cst_147 : f32 to vector<16x104xf32>
    %446 = arith.mulf %445, %444 : vector<16x104xf32>
    %447 = arith.addf %427, %446 : vector<16x104xf32>
    %448 = vector.extract_strided_slice %236 {offsets = [10, 0], sizes = [16, 104], strides = [1, 1]} : vector<32x104xf32> to vector<16x104xf32>
    %cst_148 = arith.constant 0.00102838024 : f32
    %449 = vector.broadcast %cst_148 : f32 to vector<16x104xf32>
    %450 = arith.mulf %449, %448 : vector<16x104xf32>
    %451 = arith.addf %431, %450 : vector<16x104xf32>
    %452 = vector.extract_strided_slice %240 {offsets = [10, 0], sizes = [16, 104], strides = [1, 1]} : vector<32x104xf32> to vector<16x104xf32>
    %cst_149 = arith.constant 0.00102838024 : f32
    %453 = vector.broadcast %cst_149 : f32 to vector<16x104xf32>
    %454 = arith.mulf %453, %452 : vector<16x104xf32>
    %455 = arith.addf %435, %454 : vector<16x104xf32>
    %456 = vector.extract_strided_slice %244 {offsets = [10, 0], sizes = [16, 104], strides = [1, 1]} : vector<32x104xf32> to vector<16x104xf32>
    %cst_150 = arith.constant 0.00102838024 : f32
    %457 = vector.broadcast %cst_150 : f32 to vector<16x104xf32>
    %458 = arith.mulf %457, %456 : vector<16x104xf32>
    %459 = arith.addf %439, %458 : vector<16x104xf32>
    %460 = arith.mulf %443, %443 : vector<16x104xf32>
    %461 = arith.mulf %447, %447 : vector<16x104xf32>
    %462 = arith.mulf %443, %447 : vector<16x104xf32>
    %463 = arith.subf %451, %460 : vector<16x104xf32>
    %464 = arith.subf %455, %461 : vector<16x104xf32>
    %465 = arith.subf %459, %462 : vector<16x104xf32>
    %cst_151 = arith.constant 2.000000e+00 : f32
    %466 = vector.broadcast %cst_151 : f32 to vector<16x104xf32>
    %467 = arith.mulf %466, %462 : vector<16x104xf32>
    %cst_152 = arith.constant 9.99999974E-5 : f32
    %468 = vector.broadcast %cst_152 : f32 to vector<16x104xf32>
    %469 = arith.addf %467, %468 : vector<16x104xf32>
    %cst_153 = arith.constant 2.000000e+00 : f32
    %470 = vector.broadcast %cst_153 : f32 to vector<16x104xf32>
    %471 = arith.mulf %470, %465 : vector<16x104xf32>
    %cst_154 = arith.constant 8.99999984E-4 : f32
    %472 = vector.broadcast %cst_154 : f32 to vector<16x104xf32>
    %473 = arith.addf %471, %472 : vector<16x104xf32>
    %474 = arith.mulf %469, %473 : vector<16x104xf32>
    %475 = arith.addf %460, %461 : vector<16x104xf32>
    %cst_155 = arith.constant 9.99999974E-5 : f32
    %476 = vector.broadcast %cst_155 : f32 to vector<16x104xf32>
    %477 = arith.addf %475, %476 : vector<16x104xf32>
    %478 = arith.addf %463, %464 : vector<16x104xf32>
    %cst_156 = arith.constant 8.99999984E-4 : f32
    %479 = vector.broadcast %cst_156 : f32 to vector<16x104xf32>
    %480 = arith.addf %478, %479 : vector<16x104xf32>
    %481 = arith.mulf %477, %480 : vector<16x104xf32>
    %482 = tpu.reciprocal %481 {approx = true} : vector<16x104xf32> -> vector<16x104xf32>
    %483 = arith.mulf %474, %482 : vector<16x104xf32>
    %484 = tpu.iota {dimensions = array<i32: 1>} : vector<16x104xi32>
    %c16_i32 = arith.constant 16 : i32
    %485 = vector.broadcast %c16_i32 : i32 to vector<16x104xi32>
    %486 = arith.cmpi slt, %484, %485 : vector<16x104xi32>
    %c26_i32 = arith.constant 26 : i32
    %487 = vector.broadcast %c26_i32 : i32 to vector<16x104xi32>
    %488 = arith.cmpi sge, %484, %487 : vector<16x104xi32>
    %c42_i32 = arith.constant 42 : i32
    %489 = vector.broadcast %c42_i32 : i32 to vector<16x104xi32>
    %490 = arith.cmpi slt, %484, %489 : vector<16x104xi32>
    %491 = arith.andi %488, %490 : vector<16x104xi1>
    %492 = arith.ori %486, %491 : vector<16x104xi1>
    %c52_i32 = arith.constant 52 : i32
    %493 = vector.broadcast %c52_i32 : i32 to vector<16x104xi32>
    %494 = arith.cmpi sge, %484, %493 : vector<16x104xi32>
    %c68_i32 = arith.constant 68 : i32
    %495 = vector.broadcast %c68_i32 : i32 to vector<16x104xi32>
    %496 = arith.cmpi slt, %484, %495 : vector<16x104xi32>
    %497 = arith.andi %494, %496 : vector<16x104xi1>
    %498 = arith.ori %492, %497 : vector<16x104xi1>
    %c78_i32 = arith.constant 78 : i32
    %499 = vector.broadcast %c78_i32 : i32 to vector<16x104xi32>
    %500 = arith.cmpi sge, %484, %499 : vector<16x104xi32>
    %c94_i32 = arith.constant 94 : i32
    %501 = vector.broadcast %c94_i32 : i32 to vector<16x104xi32>
    %502 = arith.cmpi slt, %484, %501 : vector<16x104xi32>
    %503 = arith.andi %500, %502 : vector<16x104xi1>
    %504 = arith.ori %498, %503 : vector<16x104xi1>
    %cst_157 = arith.constant 0.000000e+00 : f32
    %505 = vector.broadcast %cst_157 : f32 to vector<16x104xf32>
    %506 = arith.select %504, %483, %505 : vector<16x104xi1>, vector<16x104xf32>
    %507 = vector.shape_cast %506 : vector<16x104xf32> to vector<1x16x104xf32>
    %cst_158 = arith.constant dense<0.000000e+00> : vector<1xf32>
    %508 = vector.multi_reduction <add>, %507, %cst_158 [1, 2] : vector<1x16x104xf32> to vector<1xf32>
    %509 = vector.shape_cast %508 : vector<1xf32> to vector<1x1x1xf32>
    %510 = vector.extract %509[0, 0, 0] : f32 from vector<1x1x1xf32>
    %511 = vector.broadcast %510 : f32 to vector<1x1x1xf32>
    %c0_159 = arith.constant 0 : index
    %c0_160 = arith.constant 0 : index
    %c0_161 = arith.constant 0 : index
    %512 = vector.load %arg3[%c0_159, %c0_160, %c0_161] : memref<1x1x1xf32, #tpu.memory_space<vmem>>, vector<1x1x1xf32>
    tpu.vector_store %arg3[%c0_159, %c0_160, %c0_161], %511 {strides = array<i32>} : memref<1x1x1xf32, #tpu.memory_space<vmem>>, vector<1x1x1xf32>,
    return
  }
  func.func @transform_0(%arg0: i32) -> (i32, i32, i32) {
    %c0_i32 = arith.constant 0 : i32
    %c0_i32_0 = arith.constant 0 : i32
    %c0_i32_1 = arith.constant 0 : i32
    return %arg0, %c0_i32, %c0_i32_0 : i32, i32, i32
  }
  func.func @transform_1(%arg0: i32) -> (i32, i32, i32) {
    %c0_i32 = arith.constant 0 : i32
    %c0_i32_0 = arith.constant 0 : i32
    %c0_i32_1 = arith.constant 0 : i32
    return %arg0, %c0_i32, %c0_i32_0 : i32, i32, i32
  }
  func.func @transform_2(%arg0: i32) -> (i32, i32, i32) {
    %c0_i32 = arith.constant 0 : i32
    %c0_i32_0 = arith.constant 0 : i32
    %c0_i32_1 = arith.constant 0 : i32
    return %arg0, %c0_i32, %c0_i32_0 : i32, i32, i32
  }
}

</mosaic_0001>

<llo_original>
// kernel: tpu_custom_call.1
$region0: #{tpu_custom_call.1}
  #allocation0 [shape = 'u32[]', space=smem, size = 0x4, offset = 0x4, fixed_abs, tag = 'smem constant byte address 0x4 - core index']
  #allocation1 [shape = 'u32[144,128]{1,0:T(1,128)}', space=vmem, size = 0x12000, scoped, tag = 'internal scratch']
  #allocation2 [shape = 'f32[32,128]{1,0:T(8,128)}', space=vmem, size = 0x4000, scoped, tag = 'scratch operand']
  #allocation3 [shape = 'f32[32,128]{1,0:T(8,128)}', space=vmem, size = 0x4000, scoped, tag = 'scratch operand']
  %s0 = inlined_call_operand.hbm [shape: f32[8,16,16], index: 0, kind: input, shape index: {}]
  %s1 = inlined_call_operand.hbm [shape: f32[8,16,16], index: 1, kind: input, shape index: {}]
  %s2 = inlined_call_operand.vmem [shape: f32[2,1,1], index: 2, kind: output, shape index: {}]
  %s3 = sld [smem:[#allocation0]]
  $region49: #{tpu_custom_call.1} parent=0
    _
  %s5 = ssub.s32 1, %s3
  %s6 = scalar_select 0, %s5, %s3
  $region1: #{tpu_custom_call.1} parent=0
    #allocation4 [shape = 'u8[65536]{0}', space=vmem, size = 0x10000, scoped, tag = 'input window, operand 0']
    #allocation5 [shape = 's32[2]{0}', space=sflag, size = 0x8, scoped, tag = 'scoped memory for tpu_custom_call.1']
    #allocation6 [shape = 'u8[65536]{0}', space=vmem, size = 0x10000, scoped, tag = 'input window, operand 1']
    #allocation7 [shape = 's32[2]{0}', space=sflag, size = 0x8, scoped, tag = 'scoped memory for tpu_custom_call.1']
    %7 = vsyncpa [#allocation5], 0
    %s8 = scalar_lea.sflag [#allocation5], 1
    %9 = vsyncpa %s8, 0
    %10 = vsyncpa [#allocation7], 0
    %s11 = scalar_lea.sflag [#allocation7], 1
    %12 = vsyncpa %s11, 0
    loop: start=0, step=1, limit=4
    $region2: #{tpu_custom_call.1} parent=1 // loop_pre_header
      _
    $region3: #{tpu_custom_call.1} parent=1 // loop_header
      %s14 = sphi 0, %s18
      %p15 = scmp.ge.s32.totalorder %s14, 4
      %s24 = sphi 0, %s26
      %s27 = sphi 0, %s24
      %s28 = sphi 0, %s27
      %s44 = sphi 0, %s28
      %s50 = sphi 0, %s52
      %s53 = sphi 0, %s50
      %s54 = sphi 0, %s53
      %s70 = sphi 0, %s54
      %s76 = sphi 0, %s78
      %s79 = sphi 0, %s76
      %s80 = sphi 0, %s79
      %s96 = sphi 0, %s80
    $region4: #{tpu_custom_call.1} parent=1 // loop_header_branch
      %17 = sbr.rel (%p15) target = $region8
    $region5: #{tpu_custom_call.1} parent=1 // loop_body
      %s19 = ssub.s32 %s14, 1
      %s20 = ssub.s32 %s14, 2
      %s21 = sadd.s32 %s14, 1
      %s22 = ssub.s32 %s14, %s21
      %p23 = scmp.eq.s32.totalorder %s22, 0
      %s25 = sadd.s32 %s24, 1
      %s26 = scalar_select %p23, %s24, %s25
      %p29 = pneg %p23
      %p30 = scmp.eq.s32.totalorder %s14, 1
      %p31 = por %p29, %p30
      %p32 = scmp.ne.s32.totalorder %s24, %s27
      %p33 = scmp.eq.s32.totalorder %s14, 0
      %p34 = por %p32, %p33
      %p35 = scmp.ne.s32.totalorder %s24, %s27
      %p36 = scmp.eq.s32.totalorder %s19, 1
      %p37 = por %p35, %p36
      %p38 = scmp.ne.s32.totalorder %s27, %s28
      %p39 = scmp.eq.s32.totalorder %s19, 0
      %p40 = por %p38, %p39
      %p41 = scmp.ne.s32.totalorder %s27, %s28
      %p42 = scmp.eq.s32.totalorder %s20, 1
      %p43 = por %p41, %p42
      %p45 = scmp.ne.s32.totalorder %s28, %s44
      %p46 = scmp.eq.s32.totalorder %s20, 0
      %p47 = por %p45, %p46
      %s48 = ssub.s32 %s14, %s21
      %p49 = scmp.eq.s32.totalorder %s48, 0
      %s51 = sadd.s32 %s50, 1
      %s52 = scalar_select %p49, %s50, %s51
      %p55 = pneg %p49
      %p56 = scmp.eq.s32.totalorder %s14, 1
      %p57 = por %p55, %p56
      %p58 = scmp.ne.s32.totalorder %s50, %s53
      %p59 = scmp.eq.s32.totalorder %s14, 0
      %p60 = por %p58, %p59
      %p61 = scmp.ne.s32.totalorder %s50, %s53
      %p62 = scmp.eq.s32.totalorder %s19, 1
      %p63 = por %p61, %p62
      %p64 = scmp.ne.s32.totalorder %s53, %s54
      %p65 = scmp.eq.s32.totalorder %s19, 0
      %p66 = por %p64, %p65
      %p67 = scmp.ne.s32.totalorder %s53, %s54
      %p68 = scmp.eq.s32.totalorder %s20, 1
      %p69 = por %p67, %p68
      %p71 = scmp.ne.s32.totalorder %s54, %s70
      %p72 = scmp.eq.s32.totalorder %s20, 0
      %p73 = por %p71, %p72
      %s74 = ssub.s32 %s14, %s21
      %p75 = scmp.eq.s32.totalorder %s74, 0
      %s77 = sadd.s32 %s76, 1
      %s78 = scalar_select %p75, %s76, %s77
      %p81 = pneg %p75
      %p82 = scmp.eq.s32.totalorder %s14, 1
      %p83 = por %p81, %p82
      %p84 = scmp.ne.s32.totalorder %s76, %s79
      %p85 = scmp.eq.s32.totalorder %s14, 0
      %p86 = por %p84, %p85
      %p87 = scmp.ne.s32.totalorder %s76, %s79
      %p88 = scmp.eq.s32.totalorder %s19, 1
      %p89 = por %p87, %p88
      %p90 = scmp.ne.s32.totalorder %s79, %s80
      %p91 = scmp.eq.s32.totalorder %s19, 0
      %p92 = por %p90, %p91
      %p93 = scmp.ne.s32.totalorder %s79, %s80
      %p94 = scmp.eq.s32.totalorder %s20, 1
      %p95 = por %p93, %p94
      %p97 = scmp.ne.s32.totalorder %s80, %s96
      %p98 = scmp.eq.s32.totalorder %s20, 0
      %p99 = por %p97, %p98
      %p100 = scmp.le.s32.totalorder 1, %s14
      %p101 = scmp.lt.s32.totalorder %s14, 3
      %p102 = pnand %p100, %p101
      %p103 = pneg %p102
      // Predicated region
      $region9: #{tpu_custom_call.1} parent=5 // pred_check
        _
      $region10: #{tpu_custom_call.1} parent=5 // pred_check_branch
        %105 = sbr.rel (%p102) target = $region12
      $region11: #{tpu_custom_call.1} parent=5 // pred_region
        %s106 = ssub.s32 %s14, 1
      $region12: #{tpu_custom_call.1} parent=5 // pred_fallthru
        _
      %p107 = scmp.lt.s32.totalorder %s14, 2
      // Predicated region
      $region13: #{tpu_custom_call.1} parent=5 // pred_check
        %p108 = pneg %p107
      $region14: #{tpu_custom_call.1} parent=5 // pred_check_branch
        %110 = sbr.rel (%p108) target = $region16
      $region15: #{tpu_custom_call.1} parent=5 // pred_region
        // Predicated region
        $region17: #{tpu_custom_call.1} parent=15 // pred_check
          %p111 = pneg %p34
        $region18: #{tpu_custom_call.1} parent=15 // pred_check_branch
          %113 = sbr.rel (%p111) target = $region20
        $region19: #{tpu_custom_call.1} parent=15 // pred_region
          %s114 = sand.u32 %s24, 1
          %s115 = scalar_lea.sflag [#allocation5], %s114
          %s116 = sand.u32 %s24, 1
          %s117 = smul.addr %s116, 64
          %s118 = scalar_lea.vmem [#allocation4], %s117
          %s119 = smul.u32 4, %s14
          %s121 = ssub.s32 1024, 1024
          %122 = vsyncadd %s115, %s121
          %s123 = smul.addr %s119, 2
          %s124 = smul.addr %s123, 128
          %s125 = scalar_lea.hbm %s0, %s124
          %s126 = sshll.u32 %s118, 4
          %s127 = int_to_ptr.vmem [resolvable:$true] %s126
          %132 = dma.hbm_to_vmem [thread:$0]  %s125, 1024, %s127, %s115, 128, 128, 8
        $region20: #{tpu_custom_call.1} parent=15 // pred_fallthru
          _
        // Predicated region
        $region21: #{tpu_custom_call.1} parent=15 // pred_check
          %p133 = pneg %p60
        $region22: #{tpu_custom_call.1} parent=15 // pred_check_branch
          %135 = sbr.rel (%p133) target = $region24
        $region23: #{tpu_custom_call.1} parent=15 // pred_region
          %s136 = sand.u32 %s50, 1
          %s137 = scalar_lea.sflag [#allocation7], %s136
          %s138 = sand.u32 %s50, 1
          %s139 = smul.addr %s138, 64
          %s140 = scalar_lea.vmem [#allocation6], %s139
          %s141 = smul.u32 4, %s14
          %s143 = ssub.s32 1024, 1024
          %144 = vsyncadd %s137, %s143
          %s145 = smul.addr %s141, 2
          %s146 = smul.addr %s145, 128
          %s147 = scalar_lea.hbm %s1, %s146
          %s148 = sshll.u32 %s140, 4
          %s149 = int_to_ptr.vmem [resolvable:$true] %s148
          %154 = dma.hbm_to_vmem [thread:$0]  %s147, 1024, %s149, %s137, 128, 128, 8
        $region24: #{tpu_custom_call.1} parent=15 // pred_fallthru
          _
      $region16: #{tpu_custom_call.1} parent=5 // pred_fallthru
        _
      %p155 = scmp.le.s32.totalorder 1, %s14
      %p156 = scmp.lt.s32.totalorder %s14, 3
      %p157 = pnand %p155, %p156
      %p158 = pneg %p157
      // Predicated region
      $region25: #{tpu_custom_call.1} parent=5 // pred_check
        _
      $region26: #{tpu_custom_call.1} parent=5 // pred_check_branch
        %160 = sbr.rel (%p157) target = $region28
      $region27: #{tpu_custom_call.1} parent=5 // pred_region
        %s161 = ssub.s32 %s14, 1
        %s162 = sand.u32 %s27, 1
        %s163 = scalar_lea.sflag [#allocation5], %s162
        %s164 = sand.u32 %s27, 1
        %s165 = smul.addr %s164, 64
        %s166 = scalar_lea.vmem [#allocation4], %s165
        // Predicated region
        $region29: #{tpu_custom_call.1} parent=27 // pred_check
          %p167 = pneg %p40
        $region30: #{tpu_custom_call.1} parent=27 // pred_check_branch
          %169 = sbr.rel (%p167) target = $region32
        $region31: #{tpu_custom_call.1} parent=27 // pred_region
          %170 = dma.done %s163, 1024
        $region32: #{tpu_custom_call.1} parent=27 // pred_fallthru
          _
        %s171 = sand.u32 %s53, 1
        %s172 = scalar_lea.sflag [#allocation7], %s171
        %s173 = sand.u32 %s53, 1
        %s174 = smul.addr %s173, 64
        %s175 = scalar_lea.vmem [#allocation6], %s174
        // Predicated region
        $region33: #{tpu_custom_call.1} parent=27 // pred_check
          %p176 = pneg %p66
        $region34: #{tpu_custom_call.1} parent=27 // pred_check_branch
          %178 = sbr.rel (%p176) target = $region36
        $region35: #{tpu_custom_call.1} parent=27 // pred_region
          %179 = dma.done %s172, 1024
        $region36: #{tpu_custom_call.1} parent=27 // pred_fallthru
          _
        %s180 = sand.u32 %s27, 1
        %s181 = scalar_lea.sflag [#allocation5], %s180
        %s182 = sand.u32 %s27, 1
        %s183 = smul.addr %s182, 64
        %s184 = scalar_lea.vmem [#allocation4], %s183
        %p185 = pneg %p40
        %p186 = pneg %p37
        %s187 = sand.u32 %s53, 1
        %s188 = scalar_lea.sflag [#allocation7], %s187
        %s189 = sand.u32 %s53, 1
        %s190 = smul.addr %s189, 64
        %s191 = scalar_lea.vmem [#allocation6], %s190
        %p192 = pneg %p66
        %p193 = pneg %p63
        %p194 = pneg %p92
        %p195 = pneg %p89
        %p196 = scmp.lt.s32.totalorder %s19, 1
        %s197 = scalar_select %p196, %s19, 1
        %s198 = scalar_lea.vmem %s2, %s197
        %s199 = smul.u32 4, %s19
        %s200 = smul.u32 4, %s19
        %p201 = scmp.lt.s32.totalorder %s19, 1
        %s202 = scalar_select %p201, %s19, 1
        %s203 = scalar_lea.vmem %s2, %s202
        %204 = vst [vmem:[#allocation2] sm:$0xff] 0.0
        %205 = vst [vmem:[#allocation2 + $0x8] sm:$0xff] 0.0
        %206 = vst [vmem:[#allocation2 + $0x10] sm:$0xff] 0.0
        %207 = vst [vmem:[#allocation2 + $0x18] sm:$0xff] 0.0
        %208 = vst [vmem:[#allocation3] sm:$0xff] 0.0
        %209 = vst [vmem:[#allocation3 + $0x8] sm:$0xff] 0.0
        %210 = vst [vmem:[#allocation3 + $0x10] sm:$0xff] 0.0
        %211 = vst [vmem:[#allocation3 + $0x18] sm:$0xff] 0.0
        %v212 = vld [vmem:[%s166] sm:$0xff]
        %v213 = vld [vmem:[%s166 + $0x8] sm:$0xff]
        %216 = vrot.lane.b32.xlu0 %v212, 5
        %v217 = vpop.permute.xlu0 %216
        %218 = vrot.lane.b32.xlu0 %v213, 5
        %v219 = vpop.permute.xlu0 %218
        %vm222 = vcmask 171048
        %223 = vst.msk [vmem:[#allocation2 + $0x5] sm:$0xff] %vm222, %v217
        %224 = vst.msk [vmem:[#allocation2 + $0xd] sm:$0xff] %vm222, %v219
        %v225 = vld [vmem:[%s175] sm:$0xff]
        %v226 = vld [vmem:[%s175 + $0x8] sm:$0xff]
        %229 = vrot.lane.b32.xlu0 %v225, 5
        %v230 = vpop.permute.xlu0 %229
        %231 = vrot.lane.b32.xlu0 %v226, 5
        %v232 = vpop.permute.xlu0 %231
        %235 = vst.msk [vmem:[#allocation3 + $0x5] sm:$0xff] %vm222, %v230
        %236 = vst.msk [vmem:[#allocation3 + $0xd] sm:$0xff] %vm222, %v232
        %s237 = scalar_lea.vmem %s166, 16 [#allocation4]
        %v238 = vld [vmem:[%s237] sm:$0xff]
        %v239 = vld [vmem:[%s237 + $0x8] sm:$0xff]
        %242 = vrot.lane.b32.xlu0 %v238, 31
        %v243 = vpop.permute.xlu0 %242
        %244 = vrot.lane.b32.xlu0 %v239, 31
        %v245 = vpop.permute.xlu0 %244
        %vm248 = vcmask 384248
        %249 = vst.msk [vmem:[#allocation2 + $0x5] sm:$0xff] %vm248, %v243
        %250 = vst.msk [vmem:[#allocation2 + $0xd] sm:$0xff] %vm248, %v245
        %s251 = scalar_lea.vmem %s175, 16 [#allocation6]
        %v252 = vld [vmem:[%s251] sm:$0xff]
        %v253 = vld [vmem:[%s251 + $0x8] sm:$0xff]
        %256 = vrot.lane.b32.xlu0 %v252, 31
        %v257 = vpop.permute.xlu0 %256
        %258 = vrot.lane.b32.xlu0 %v253, 31
        %v259 = vpop.permute.xlu0 %258
        %262 = vst.msk [vmem:[#allocation3 + $0x5] sm:$0xff] %vm248, %v257
        %263 = vst.msk [vmem:[#allocation3 + $0xd] sm:$0xff] %vm248, %v259
        %s264 = scalar_lea.vmem %s166, 32 [#allocation4]
        %v265 = vld [vmem:[%s264] sm:$0xff]
        %v266 = vld [vmem:[%s264 + $0x8] sm:$0xff]
        %269 = vrot.lane.b32.xlu0 %v265, 57
        %v270 = vpop.permute.xlu0 %269
        %271 = vrot.lane.b32.xlu0 %v266, 57
        %v272 = vpop.permute.xlu0 %271
        %vm275 = vcmask 597448
        %276 = vst.msk [vmem:[#allocation2 + $0x5] sm:$0xff] %vm275, %v270
        %277 = vst.msk [vmem:[#allocation2 + $0xd] sm:$0xff] %vm275, %v272
        %s278 = scalar_lea.vmem %s175, 32 [#allocation6]
        %v279 = vld [vmem:[%s278] sm:$0xff]
        %v280 = vld [vmem:[%s278 + $0x8] sm:$0xff]
        %283 = vrot.lane.b32.xlu0 %v279, 57
        %v284 = vpop.permute.xlu0 %283
        %285 = vrot.lane.b32.xlu0 %v280, 57
        %v286 = vpop.permute.xlu0 %285
        %289 = vst.msk [vmem:[#allocation3 + $0x5] sm:$0xff] %vm275, %v284
        %290 = vst.msk [vmem:[#allocation3 + $0xd] sm:$0xff] %vm275, %v286
        %s291 = scalar_lea.vmem %s166, 48 [#allocation4]
        %v292 = vld [vmem:[%s291] sm:$0xff]
        %v293 = vld [vmem:[%s291 + $0x8] sm:$0xff]
        %296 = vrot.lane.b32.xlu0 %v292, 83
        %v297 = vpop.permute.xlu0 %296
        %298 = vrot.lane.b32.xlu0 %v293, 83
        %v299 = vpop.permute.xlu0 %298
        %vm302 = vcmask 810648
        %303 = vst.msk [vmem:[#allocation2 + $0x5] sm:$0xff] %vm302, %v297
        %304 = vst.msk [vmem:[#allocation2 + $0xd] sm:$0xff] %vm302, %v299
        %s305 = scalar_lea.vmem %s175, 48 [#allocation6]
        %v306 = vld [vmem:[%s305] sm:$0xff]
        %v307 = vld [vmem:[%s305 + $0x8] sm:$0xff]
        %310 = vrot.lane.b32.xlu0 %v306, 83
        %v311 = vpop.permute.xlu0 %310
        %312 = vrot.lane.b32.xlu0 %v307, 83
        %v313 = vpop.permute.xlu0 %312
        %316 = vst.msk [vmem:[#allocation3 + $0x5] sm:$0xff] %vm302, %v311
        %317 = vst.msk [vmem:[#allocation3 + $0xd] sm:$0xff] %vm302, %v313
        %v318 = vld [vmem:[#allocation2] sm:$0xff]
        %v319 = vld [vmem:[#allocation2 + $0x8] sm:$0xff]
        %v320 = vld [vmem:[#allocation2 + $0x10] sm:$0xff]
        %v321 = vld [vmem:[#allocation2 + $0x18] sm:$0xff]
        %v322 = vld [vmem:[#allocation3] sm:$0xff]
        %v323 = vld [vmem:[#allocation3 + $0x8] sm:$0xff]
        %v324 = vld [vmem:[#allocation3 + $0x10] sm:$0xff]
        %v325 = vld [vmem:[#allocation3 + $0x18] sm:$0xff]
        %v326 = vmul.f32 %v318, 0.0010283802
        %v327 = vmul.f32 %v319, 0.0010283802
        %v328 = vmul.f32 %v320, 0.0010283802
        %v329 = vmul.f32 %v321, 0.0010283802
        %v330 = vmul.f32 %v322, 0.0010283802
        %v331 = vmul.f32 %v323, 0.0010283802
        %v332 = vmul.f32 %v324, 0.0010283802
        %v333 = vmul.f32 %v325, 0.0010283802
        %v334 = vmul.f32 %v318, %v318
        %v335 = vmul.f32 %v319, %v319
        %v336 = vmul.f32 %v320, %v320
        %v337 = vmul.f32 %v321, %v321
        %v338 = vmul.f32 %v334, 0.0010283802
        %v339 = vmul.f32 %v335, 0.0010283802
        %v340 = vmul.f32 %v336, 0.0010283802
        %v341 = vmul.f32 %v337, 0.0010283802
        %v342 = vmul.f32 %v322, %v322
        %v343 = vmul.f32 %v323, %v323
        %v344 = vmul.f32 %v324, %v324
        %v345 = vmul.f32 %v325, %v325
        %v346 = vmul.f32 %v342, 0.0010283802
        %v347 = vmul.f32 %v343, 0.0010283802
        %v348 = vmul.f32 %v344, 0.0010283802
        %v349 = vmul.f32 %v345, 0.0010283802
        %v350 = vmul.f32 %v318, %v322
        %v351 = vmul.f32 %v319, %v323
        %v352 = vmul.f32 %v320, %v324
        %v353 = vmul.f32 %v321, %v325
        %v354 = vmul.f32 %v350, 0.0010283802
        %v355 = vmul.f32 %v351, 0.0010283802
        %v356 = vmul.f32 %v352, 0.0010283802
        %v357 = vmul.f32 %v353, 0.0010283802
        %v358 = vmul.f32 %v318, 0.0075987587
        %v359 = vmul.f32 %v319, 0.0075987587
        %v360 = vmul.f32 %v320, 0.0075987587
        %v361 = vmul.f32 %v321, 0.0075987587
        %366 = vrot.lane.b32.xlu0 %v358, 127
        %v367 = vpop.permute.xlu0 %366
        %368 = vrot.lane.b32.xlu0 %v359, 127
        %v369 = vpop.permute.xlu0 %368
        %370 = vrot.lane.b32.xlu0 %v360, 127
        %v371 = vpop.permute.xlu0 %370
        %372 = vrot.lane.b32.xlu0 %v361, 127
        %v373 = vpop.permute.xlu0 %372
        %v378 = vadd.f32 %v326, %v367
        %v379 = vadd.f32 %v327, %v369
        %v380 = vadd.f32 %v328, %v371
        %v381 = vadd.f32 %v329, %v373
        %v382 = vmul.f32 %v322, 0.0075987587
        %v383 = vmul.f32 %v323, 0.0075987587
        %v384 = vmul.f32 %v324, 0.0075987587
        %v385 = vmul.f32 %v325, 0.0075987587
        %390 = vrot.lane.b32.xlu0 %v382, 127
        %v391 = vpop.permute.xlu0 %390
        %392 = vrot.lane.b32.xlu0 %v383, 127
        %v393 = vpop.permute.xlu0 %392
        %394 = vrot.lane.b32.xlu0 %v384, 127
        %v395 = vpop.permute.xlu0 %394
        %396 = vrot.lane.b32.xlu0 %v385, 127
        %v397 = vpop.permute.xlu0 %396
        %v402 = vadd.f32 %v330, %v391
        %v403 = vadd.f32 %v331, %v393
        %v404 = vadd.f32 %v332, %v395
        %v405 = vadd.f32 %v333, %v397
        %v406 = vmul.f32 %v334, 0.0075987587
        %v407 = vmul.f32 %v335, 0.0075987587
        %v408 = vmul.f32 %v336, 0.0075987587
        %v409 = vmul.f32 %v337, 0.0075987587
        %414 = vrot.lane.b32.xlu0 %v406, 127
        %v415 = vpop.permute.xlu0 %414
        %416 = vrot.lane.b32.xlu0 %v407, 127
        %v417 = vpop.permute.xlu0 %416
        %418 = vrot.lane.b32.xlu0 %v408, 127
        %v419 = vpop.permute.xlu0 %418
        %420 = vrot.lane.b32.xlu0 %v409, 127
        %v421 = vpop.permute.xlu0 %420
        %v426 = vadd.f32 %v338, %v415
        %v427 = vadd.f32 %v339, %v417
        %v428 = vadd.f32 %v340, %v419
        %v429 = vadd.f32 %v341, %v421
        %v430 = vmul.f32 %v342, 0.0075987587
        %v431 = vmul.f32 %v343, 0.0075987587
        %v432 = vmul.f32 %v344, 0.0075987587
        %v433 = vmul.f32 %v345, 0.0075987587
        %438 = vrot.lane.b32.xlu0 %v430, 127
        %v439 = vpop.permute.xlu0 %438
        %440 = vrot.lane.b32.xlu0 %v431, 127
        %v441 = vpop.permute.xlu0 %440
        %442 = vrot.lane.b32.xlu0 %v432, 127
        %v443 = vpop.permute.xlu0 %442
        %444 = vrot.lane.b32.xlu0 %v433, 127
        %v445 = vpop.permute.xlu0 %444
        %v450 = vadd.f32 %v346, %v439
        %v451 = vadd.f32 %v347, %v441
        %v452 = vadd.f32 %v348, %v443
        %v453 = vadd.f32 %v349, %v445
        %v454 = vmul.f32 %v350, 0.0075987587
        %v455 = vmul.f32 %v351, 0.0075987587
        %v456 = vmul.f32 %v352, 0.0075987587
        %v457 = vmul.f32 %v353, 0.0075987587
        %462 = vrot.lane.b32.xlu0 %v454, 127
        %v463 = vpop.permute.xlu0 %462
        %464 = vrot.lane.b32.xlu0 %v455, 127
        %v465 = vpop.permute.xlu0 %464
        %466 = vrot.lane.b32.xlu0 %v456, 127
        %v467 = vpop.permute.xlu0 %466
        %468 = vrot.lane.b32.xlu0 %v457, 127
        %v469 = vpop.permute.xlu0 %468
        %v474 = vadd.f32 %v354, %v463
        %v475 = vadd.f32 %v355, %v465
        %v476 = vadd.f32 %v356, %v467
        %v477 = vadd.f32 %v357, %v469
        %v478 = vmul.f32 %v318, 0.036000773
        %v479 = vmul.f32 %v319, 0.036000773
        %v480 = vmul.f32 %v320, 0.036000773
        %v481 = vmul.f32 %v321, 0.036000773
        %486 = vrot.lane.b32.xlu0 %v478, 126
        %v487 = vpop.permute.xlu0 %486
        %488 = vrot.lane.b32.xlu0 %v479, 126
        %v489 = vpop.permute.xlu0 %488
        %490 = vrot.lane.b32.xlu0 %v480, 126
        %v491 = vpop.permute.xlu0 %490
        %492 = vrot.lane.b32.xlu0 %v481, 126
        %v493 = vpop.permute.xlu0 %492
        %v498 = vadd.f32 %v378, %v487
        %v499 = vadd.f32 %v379, %v489
        %v500 = vadd.f32 %v380, %v491
        %v501 = vadd.f32 %v381, %v493
        %v502 = vmul.f32 %v322, 0.036000773
        %v503 = vmul.f32 %v323, 0.036000773
        %v504 = vmul.f32 %v324, 0.036000773
        %v505 = vmul.f32 %v325, 0.036000773
        %510 = vrot.lane.b32.xlu0 %v502, 126
        %v511 = vpop.permute.xlu0 %510
        %512 = vrot.lane.b32.xlu0 %v503, 126
        %v513 = vpop.permute.xlu0 %512
        %514 = vrot.lane.b32.xlu0 %v504, 126
        %v515 = vpop.permute.xlu0 %514
        %516 = vrot.lane.b32.xlu0 %v505, 126
        %v517 = vpop.permute.xlu0 %516
        %v522 = vadd.f32 %v402, %v511
        %v523 = vadd.f32 %v403, %v513
        %v524 = vadd.f32 %v404, %v515
        %v525 = vadd.f32 %v405, %v517
        %v526 = vmul.f32 %v334, 0.036000773
        %v527 = vmul.f32 %v335, 0.036000773
        %v528 = vmul.f32 %v336, 0.036000773
        %v529 = vmul.f32 %v337, 0.036000773
        %534 = vrot.lane.b32.xlu0 %v526, 126
        %v535 = vpop.permute.xlu0 %534
        %536 = vrot.lane.b32.xlu0 %v527, 126
        %v537 = vpop.permute.xlu0 %536
        %538 = vrot.lane.b32.xlu0 %v528, 126
        %v539 = vpop.permute.xlu0 %538
        %540 = vrot.lane.b32.xlu0 %v529, 126
        %v541 = vpop.permute.xlu0 %540
        %v546 = vadd.f32 %v426, %v535
        %v547 = vadd.f32 %v427, %v537
        %v548 = vadd.f32 %v428, %v539
        %v549 = vadd.f32 %v429, %v541
        %v550 = vmul.f32 %v342, 0.036000773
        %v551 = vmul.f32 %v343, 0.036000773
        %v552 = vmul.f32 %v344, 0.036000773
        %v553 = vmul.f32 %v345, 0.036000773
        %558 = vrot.lane.b32.xlu0 %v550, 126
        %v559 = vpop.permute.xlu0 %558
        %560 = vrot.lane.b32.xlu0 %v551, 126
        %v561 = vpop.permute.xlu0 %560
        %562 = vrot.lane.b32.xlu0 %v552, 126
        %v563 = vpop.permute.xlu0 %562
        %564 = vrot.lane.b32.xlu0 %v553, 126
        %v565 = vpop.permute.xlu0 %564
        %v570 = vadd.f32 %v450, %v559
        %v571 = vadd.f32 %v451, %v561
        %v572 = vadd.f32 %v452, %v563
        %v573 = vadd.f32 %v453, %v565
        %v574 = vmul.f32 %v350, 0.036000773
        %v575 = vmul.f32 %v351, 0.036000773
        %v576 = vmul.f32 %v352, 0.036000773
        %v577 = vmul.f32 %v353, 0.036000773
        %582 = vrot.lane.b32.xlu0 %v574, 126
        %v583 = vpop.permute.xlu0 %582
        %584 = vrot.lane.b32.xlu0 %v575, 126
        %v585 = vpop.permute.xlu0 %584
        %586 = vrot.lane.b32.xlu0 %v576, 126
        %v587 = vpop.permute.xlu0 %586
        %588 = vrot.lane.b32.xlu0 %v577, 126
        %v589 = vpop.permute.xlu0 %588
        %v594 = vadd.f32 %v474, %v583
        %v595 = vadd.f32 %v475, %v585
        %v596 = vadd.f32 %v476, %v587
        %v597 = vadd.f32 %v477, %v589
        %v598 = vmul.f32 %v318, 0.109360695
        %v599 = vmul.f32 %v319, 0.109360695
        %v600 = vmul.f32 %v320, 0.109360695
        %v601 = vmul.f32 %v321, 0.109360695
        %606 = vrot.lane.b32.xlu0 %v598, 125
        %v607 = vpop.permute.xlu0 %606
        %608 = vrot.lane.b32.xlu0 %v599, 125
        %v609 = vpop.permute.xlu0 %608
        %610 = vrot.lane.b32.xlu0 %v600, 125
        %v611 = vpop.permute.xlu0 %610
        %612 = vrot.lane.b32.xlu0 %v601, 125
        %v613 = vpop.permute.xlu0 %612
        %v618 = vadd.f32 %v498, %v607
        %v619 = vadd.f32 %v499, %v609
        %v620 = vadd.f32 %v500, %v611
        %v621 = vadd.f32 %v501, %v613
        %v622 = vmul.f32 %v322, 0.109360695
        %v623 = vmul.f32 %v323, 0.109360695
        %v624 = vmul.f32 %v324, 0.109360695
        %v625 = vmul.f32 %v325, 0.109360695
        %630 = vrot.lane.b32.xlu0 %v622, 125
        %v631 = vpop.permute.xlu0 %630
        %632 = vrot.lane.b32.xlu0 %v623, 125
        %v633 = vpop.permute.xlu0 %632
        %634 = vrot.lane.b32.xlu0 %v624, 125
        %v635 = vpop.permute.xlu0 %634
        %636 = vrot.lane.b32.xlu0 %v625, 125
        %v637 = vpop.permute.xlu0 %636
        %v642 = vadd.f32 %v522, %v631
        %v643 = vadd.f32 %v523, %v633
        %v644 = vadd.f32 %v524, %v635
        %v645 = vadd.f32 %v525, %v637
        %v646 = vmul.f32 %v334, 0.109360695
        %v647 = vmul.f32 %v335, 0.109360695
        %v648 = vmul.f32 %v336, 0.109360695
        %v649 = vmul.f32 %v337, 0.109360695
        %654 = vrot.lane.b32.xlu0 %v646, 125
        %v655 = vpop.permute.xlu0 %654
        %656 = vrot.lane.b32.xlu0 %v647, 125
        %v657 = vpop.permute.xlu0 %656
        %658 = vrot.lane.b32.xlu0 %v648, 125
        %v659 = vpop.permute.xlu0 %658
        %660 = vrot.lane.b32.xlu0 %v649, 125
        %v661 = vpop.permute.xlu0 %660
        %v666 = vadd.f32 %v546, %v655
        %v667 = vadd.f32 %v547, %v657
        %v668 = vadd.f32 %v548, %v659
        %v669 = vadd.f32 %v549, %v661
        %v670 = vmul.f32 %v342, 0.109360695
        %v671 = vmul.f32 %v343, 0.109360695
        %v672 = vmul.f32 %v344, 0.109360695
        %v673 = vmul.f32 %v345, 0.109360695
        %678 = vrot.lane.b32.xlu0 %v670, 125
        %v679 = vpop.permute.xlu0 %678
        %680 = vrot.lane.b32.xlu0 %v671, 125
        %v681 = vpop.permute.xlu0 %680
        %682 = vrot.lane.b32.xlu0 %v672, 125
        %v683 = vpop.permute.xlu0 %682
        %684 = vrot.lane.b32.xlu0 %v673, 125
        %v685 = vpop.permute.xlu0 %684
        %v690 = vadd.f32 %v570, %v679
        %v691 = vadd.f32 %v571, %v681
        %v692 = vadd.f32 %v572, %v683
        %v693 = vadd.f32 %v573, %v685
        %v694 = vmul.f32 %v350, 0.109360695
        %v695 = vmul.f32 %v351, 0.109360695
        %v696 = vmul.f32 %v352, 0.109360695
        %v697 = vmul.f32 %v353, 0.109360695
        %702 = vrot.lane.b32.xlu0 %v694, 125
        %v703 = vpop.permute.xlu0 %702
        %704 = vrot.lane.b32.xlu0 %v695, 125
        %v705 = vpop.permute.xlu0 %704
        %706 = vrot.lane.b32.xlu0 %v696, 125
        %v707 = vpop.permute.xlu0 %706
        %708 = vrot.lane.b32.xlu0 %v697, 125
        %v709 = vpop.permute.xlu0 %708
        %v714 = vadd.f32 %v594, %v703
        %v715 = vadd.f32 %v595, %v705
        %v716 = vadd.f32 %v596, %v707
        %v717 = vadd.f32 %v597, %v709
        %v718 = vmul.f32 %v318, 0.21300554
        %v719 = vmul.f32 %v319, 0.21300554
        %v720 = vmul.f32 %v320, 0.21300554
        %v721 = vmul.f32 %v321, 0.21300554
        %726 = vrot.lane.b32.xlu0 %v718, 124
        %v727 = vpop.permute.xlu0 %726
        %728 = vrot.lane.b32.xlu0 %v719, 124
        %v729 = vpop.permute.xlu0 %728
        %730 = vrot.lane.b32.xlu0 %v720, 124
        %v731 = vpop.permute.xlu0 %730
        %732 = vrot.lane.b32.xlu0 %v721, 124
        %v733 = vpop.permute.xlu0 %732
        %v738 = vadd.f32 %v618, %v727
        %v739 = vadd.f32 %v619, %v729
        %v740 = vadd.f32 %v620, %v731
        %v741 = vadd.f32 %v621, %v733
        %v742 = vmul.f32 %v322, 0.21300554
        %v743 = vmul.f32 %v323, 0.21300554
        %v744 = vmul.f32 %v324, 0.21300554
        %v745 = vmul.f32 %v325, 0.21300554
        %750 = vrot.lane.b32.xlu0 %v742, 124
        %v751 = vpop.permute.xlu0 %750
        %752 = vrot.lane.b32.xlu0 %v743, 124
        %v753 = vpop.permute.xlu0 %752
        %754 = vrot.lane.b32.xlu0 %v744, 124
        %v755 = vpop.permute.xlu0 %754
        %756 = vrot.lane.b32.xlu0 %v745, 124
        %v757 = vpop.permute.xlu0 %756
        %v762 = vadd.f32 %v642, %v751
        %v763 = vadd.f32 %v643, %v753
        %v764 = vadd.f32 %v644, %v755
        %v765 = vadd.f32 %v645, %v757
        %v766 = vmul.f32 %v334, 0.21300554
        %v767 = vmul.f32 %v335, 0.21300554
        %v768 = vmul.f32 %v336, 0.21300554
        %v769 = vmul.f32 %v337, 0.21300554
        %774 = vrot.lane.b32.xlu0 %v766, 124
        %v775 = vpop.permute.xlu0 %774
        %776 = vrot.lane.b32.xlu0 %v767, 124
        %v777 = vpop.permute.xlu0 %776
        %778 = vrot.lane.b32.xlu0 %v768, 124
        %v779 = vpop.permute.xlu0 %778
        %780 = vrot.lane.b32.xlu0 %v769, 124
        %v781 = vpop.permute.xlu0 %780
        %v786 = vadd.f32 %v666, %v775
        %v787 = vadd.f32 %v667, %v777
        %v788 = vadd.f32 %v668, %v779
        %v789 = vadd.f32 %v669, %v781
        %v790 = vmul.f32 %v342, 0.21300554
        %v791 = vmul.f32 %v343, 0.21300554
        %v792 = vmul.f32 %v344, 0.21300554
        %v793 = vmul.f32 %v345, 0.21300554
        %798 = vrot.lane.b32.xlu0 %v790, 124
        %v799 = vpop.permute.xlu0 %798
        %800 = vrot.lane.b32.xlu0 %v791, 124
        %v801 = vpop.permute.xlu0 %800
        %802 = vrot.lane.b32.xlu0 %v792, 124
        %v803 = vpop.permute.xlu0 %802
        %804 = vrot.lane.b32.xlu0 %v793, 124
        %v805 = vpop.permute.xlu0 %804
        %v810 = vadd.f32 %v690, %v799
        %v811 = vadd.f32 %v691, %v801
        %v812 = vadd.f32 %v692, %v803
        %v813 = vadd.f32 %v693, %v805
        %v814 = vmul.f32 %v350, 0.21300554
        %v815 = vmul.f32 %v351, 0.21300554
        %v816 = vmul.f32 %v352, 0.21300554
        %v817 = vmul.f32 %v353, 0.21300554
        %822 = vrot.lane.b32.xlu0 %v814, 124
        %v823 = vpop.permute.xlu0 %822
        %824 = vrot.lane.b32.xlu0 %v815, 124
        %v825 = vpop.permute.xlu0 %824
        %826 = vrot.lane.b32.xlu0 %v816, 124
        %v827 = vpop.permute.xlu0 %826
        %828 = vrot.lane.b32.xlu0 %v817, 124
        %v829 = vpop.permute.xlu0 %828
        %v834 = vadd.f32 %v714, %v823
        %v835 = vadd.f32 %v715, %v825
        %v836 = vadd.f32 %v716, %v827
        %v837 = vadd.f32 %v717, %v829
        %v838 = vmul.f32 %v318, 0.26601174
        %v839 = vmul.f32 %v319, 0.26601174
        %v840 = vmul.f32 %v320, 0.26601174
        %v841 = vmul.f32 %v321, 0.26601174
        %846 = vrot.lane.b32.xlu0 %v838, 123
        %v847 = vpop.permute.xlu0 %846
        %848 = vrot.lane.b32.xlu0 %v839, 123
        %v849 = vpop.permute.xlu0 %848
        %850 = vrot.lane.b32.xlu0 %v840, 123
        %v851 = vpop.permute.xlu0 %850
        %852 = vrot.lane.b32.xlu0 %v841, 123
        %v853 = vpop.permute.xlu0 %852
        %v858 = vadd.f32 %v738, %v847
        %v859 = vadd.f32 %v739, %v849
        %v860 = vadd.f32 %v740, %v851
        %v861 = vadd.f32 %v741, %v853
        %v862 = vmul.f32 %v322, 0.26601174
        %v863 = vmul.f32 %v323, 0.26601174
        %v864 = vmul.f32 %v324, 0.26601174
        %v865 = vmul.f32 %v325, 0.26601174
        %870 = vrot.lane.b32.xlu0 %v862, 123
        %v871 = vpop.permute.xlu0 %870
        %872 = vrot.lane.b32.xlu0 %v863, 123
        %v873 = vpop.permute.xlu0 %872
        %874 = vrot.lane.b32.xlu0 %v864, 123
        %v875 = vpop.permute.xlu0 %874
        %876 = vrot.lane.b32.xlu0 %v865, 123
        %v877 = vpop.permute.xlu0 %876
        %v882 = vadd.f32 %v762, %v871
        %v883 = vadd.f32 %v763, %v873
        %v884 = vadd.f32 %v764, %v875
        %v885 = vadd.f32 %v765, %v877
        %v886 = vmul.f32 %v334, 0.26601174
        %v887 = vmul.f32 %v335, 0.26601174
        %v888 = vmul.f32 %v336, 0.26601174
        %v889 = vmul.f32 %v337, 0.26601174
        %894 = vrot.lane.b32.xlu0 %v886, 123
        %v895 = vpop.permute.xlu0 %894
        %896 = vrot.lane.b32.xlu0 %v887, 123
        %v897 = vpop.permute.xlu0 %896
        %898 = vrot.lane.b32.xlu0 %v888, 123
        %v899 = vpop.permute.xlu0 %898
        %900 = vrot.lane.b32.xlu0 %v889, 123
        %v901 = vpop.permute.xlu0 %900
        %v906 = vadd.f32 %v786, %v895
        %v907 = vadd.f32 %v787, %v897
        %v908 = vadd.f32 %v788, %v899
        %v909 = vadd.f32 %v789, %v901
        %v910 = vmul.f32 %v342, 0.26601174
        %v911 = vmul.f32 %v343, 0.26601174
        %v912 = vmul.f32 %v344, 0.26601174
        %v913 = vmul.f32 %v345, 0.26601174
        %918 = vrot.lane.b32.xlu0 %v910, 123
        %v919 = vpop.permute.xlu0 %918
        %920 = vrot.lane.b32.xlu0 %v911, 123
        %v921 = vpop.permute.xlu0 %920
        %922 = vrot.lane.b32.xlu0 %v912, 123
        %v923 = vpop.permute.xlu0 %922
        %924 = vrot.lane.b32.xlu0 %v913, 123
        %v925 = vpop.permute.xlu0 %924
        %v930 = vadd.f32 %v810, %v919
        %v931 = vadd.f32 %v811, %v921
        %v932 = vadd.f32 %v812, %v923
        %v933 = vadd.f32 %v813, %v925
        %v934 = vmul.f32 %v350, 0.26601174
        %v935 = vmul.f32 %v351, 0.26601174
        %v936 = vmul.f32 %v352, 0.26601174
        %v937 = vmul.f32 %v353, 0.26601174
        %942 = vrot.lane.b32.xlu0 %v934, 123
        %v943 = vpop.permute.xlu0 %942
        %944 = vrot.lane.b32.xlu0 %v935, 123
        %v945 = vpop.permute.xlu0 %944
        %946 = vrot.lane.b32.xlu0 %v936, 123
        %v947 = vpop.permute.xlu0 %946
        %948 = vrot.lane.b32.xlu0 %v937, 123
        %v949 = vpop.permute.xlu0 %948
        %v954 = vadd.f32 %v834, %v943
        %v955 = vadd.f32 %v835, %v945
        %v956 = vadd.f32 %v836, %v947
        %v957 = vadd.f32 %v837, %v949
        %958 = vrot.lane.b32.xlu0 %v718, 122
        %v959 = vpop.permute.xlu0 %958
        %960 = vrot.lane.b32.xlu0 %v719, 122
        %v961 = vpop.permute.xlu0 %960
        %962 = vrot.lane.b32.xlu0 %v720, 122
        %v963 = vpop.permute.xlu0 %962
        %964 = vrot.lane.b32.xlu0 %v721, 122
        %v965 = vpop.permute.xlu0 %964
        %v970 = vadd.f32 %v858, %v959
        %v971 = vadd.f32 %v859, %v961
        %v972 = vadd.f32 %v860, %v963
        %v973 = vadd.f32 %v861, %v965
        %974 = vrot.lane.b32.xlu0 %v742, 122
        %v975 = vpop.permute.xlu0 %974
        %976 = vrot.lane.b32.xlu0 %v743, 122
        %v977 = vpop.permute.xlu0 %976
        %978 = vrot.lane.b32.xlu0 %v744, 122
        %v979 = vpop.permute.xlu0 %978
        %980 = vrot.lane.b32.xlu0 %v745, 122
        %v981 = vpop.permute.xlu0 %980
        %v986 = vadd.f32 %v882, %v975
        %v987 = vadd.f32 %v883, %v977
        %v988 = vadd.f32 %v884, %v979
        %v989 = vadd.f32 %v885, %v981
        %990 = vrot.lane.b32.xlu0 %v766, 122
        %v991 = vpop.permute.xlu0 %990
        %992 = vrot.lane.b32.xlu0 %v767, 122
        %v993 = vpop.permute.xlu0 %992
        %994 = vrot.lane.b32.xlu0 %v768, 122
        %v995 = vpop.permute.xlu0 %994
        %996 = vrot.lane.b32.xlu0 %v769, 122
        %v997 = vpop.permute.xlu0 %996
        %v1002 = vadd.f32 %v906, %v991
        %v1003 = vadd.f32 %v907, %v993
        %v1004 = vadd.f32 %v908, %v995
        %v1005 = vadd.f32 %v909, %v997
        %1006 = vrot.lane.b32.xlu0 %v790, 122
        %v1007 = vpop.permute.xlu0 %1006
        %1008 = vrot.lane.b32.xlu0 %v791, 122
        %v1009 = vpop.permute.xlu0 %1008
        %1010 = vrot.lane.b32.xlu0 %v792, 122
        %v1011 = vpop.permute.xlu0 %1010
        %1012 = vrot.lane.b32.xlu0 %v793, 122
        %v1013 = vpop.permute.xlu0 %1012
        %v1018 = vadd.f32 %v930, %v1007
        %v1019 = vadd.f32 %v931, %v1009
        %v1020 = vadd.f32 %v932, %v1011
        %v1021 = vadd.f32 %v933, %v1013
        %1022 = vrot.lane.b32.xlu0 %v814, 122
        %v1023 = vpop.permute.xlu0 %1022
        %1024 = vrot.lane.b32.xlu0 %v815, 122
        %v1025 = vpop.permute.xlu0 %1024
        %1026 = vrot.lane.b32.xlu0 %v816, 122
        %v1027 = vpop.permute.xlu0 %1026
        %1028 = vrot.lane.b32.xlu0 %v817, 122
        %v1029 = vpop.permute.xlu0 %1028
        %v1034 = vadd.f32 %v954, %v1023
        %v1035 = vadd.f32 %v955, %v1025
        %v1036 = vadd.f32 %v956, %v1027
        %v1037 = vadd.f32 %v957, %v1029
        %1038 = vrot.lane.b32.xlu0 %v598, 121
        %v1039 = vpop.permute.xlu0 %1038
        %1040 = vrot.lane.b32.xlu0 %v599, 121
        %v1041 = vpop.permute.xlu0 %1040
        %1042 = vrot.lane.b32.xlu0 %v600, 121
        %v1043 = vpop.permute.xlu0 %1042
        %1044 = vrot.lane.b32.xlu0 %v601, 121
        %v1045 = vpop.permute.xlu0 %1044
        %v1050 = vadd.f32 %v970, %v1039
        %v1051 = vadd.f32 %v971, %v1041
        %v1052 = vadd.f32 %v972, %v1043
        %v1053 = vadd.f32 %v973, %v1045
        %1054 = vrot.lane.b32.xlu0 %v622, 121
        %v1055 = vpop.permute.xlu0 %1054
        %1056 = vrot.lane.b32.xlu0 %v623, 121
        %v1057 = vpop.permute.xlu0 %1056
        %1058 = vrot.lane.b32.xlu0 %v624, 121
        %v1059 = vpop.permute.xlu0 %1058
        %1060 = vrot.lane.b32.xlu0 %v625, 121
        %v1061 = vpop.permute.xlu0 %1060
        %v1066 = vadd.f32 %v986, %v1055
        %v1067 = vadd.f32 %v987, %v1057
        %v1068 = vadd.f32 %v988, %v1059
        %v1069 = vadd.f32 %v989, %v1061
        %1070 = vrot.lane.b32.xlu0 %v646, 121
        %v1071 = vpop.permute.xlu0 %1070
        %1072 = vrot.lane.b32.xlu0 %v647, 121
        %v1073 = vpop.permute.xlu0 %1072
        %1074 = vrot.lane.b32.xlu0 %v648, 121
        %v1075 = vpop.permute.xlu0 %1074
        %1076 = vrot.lane.b32.xlu0 %v649, 121
        %v1077 = vpop.permute.xlu0 %1076
        %v1082 = vadd.f32 %v1002, %v1071
        %v1083 = vadd.f32 %v1003, %v1073
        %v1084 = vadd.f32 %v1004, %v1075
        %v1085 = vadd.f32 %v1005, %v1077
        %1086 = vrot.lane.b32.xlu0 %v670, 121
        %v1087 = vpop.permute.xlu0 %1086
        %1088 = vrot.lane.b32.xlu0 %v671, 121
        %v1089 = vpop.permute.xlu0 %1088
        %1090 = vrot.lane.b32.xlu0 %v672, 121
        %v1091 = vpop.permute.xlu0 %1090
        %1092 = vrot.lane.b32.xlu0 %v673, 121
        %v1093 = vpop.permute.xlu0 %1092
        %v1098 = vadd.f32 %v1018, %v1087
        %v1099 = vadd.f32 %v1019, %v1089
        %v1100 = vadd.f32 %v1020, %v1091
        %v1101 = vadd.f32 %v1021, %v1093
        %1102 = vrot.lane.b32.xlu0 %v694, 121
        %v1103 = vpop.permute.xlu0 %1102
        %1104 = vrot.lane.b32.xlu0 %v695, 121
        %v1105 = vpop.permute.xlu0 %1104
        %1106 = vrot.lane.b32.xlu0 %v696, 121
        %v1107 = vpop.permute.xlu0 %1106
        %1108 = vrot.lane.b32.xlu0 %v697, 121
        %v1109 = vpop.permute.xlu0 %1108
        %v1114 = vadd.f32 %v1034, %v1103
        %v1115 = vadd.f32 %v1035, %v1105
        %v1116 = vadd.f32 %v1036, %v1107
        %v1117 = vadd.f32 %v1037, %v1109
        %1118 = vrot.lane.b32.xlu0 %v478, 120
        %v1119 = vpop.permute.xlu0 %1118
        %1120 = vrot.lane.b32.xlu0 %v479, 120
        %v1121 = vpop.permute.xlu0 %1120
        %1122 = vrot.lane.b32.xlu0 %v480, 120
        %v1123 = vpop.permute.xlu0 %1122
        %1124 = vrot.lane.b32.xlu0 %v481, 120
        %v1125 = vpop.permute.xlu0 %1124
        %v1130 = vadd.f32 %v1050, %v1119
        %v1131 = vadd.f32 %v1051, %v1121
        %v1132 = vadd.f32 %v1052, %v1123
        %v1133 = vadd.f32 %v1053, %v1125
        %1134 = vrot.lane.b32.xlu0 %v502, 120
        %v1135 = vpop.permute.xlu0 %1134
        %1136 = vrot.lane.b32.xlu0 %v503, 120
        %v1137 = vpop.permute.xlu0 %1136
        %1138 = vrot.lane.b32.xlu0 %v504, 120
        %v1139 = vpop.permute.xlu0 %1138
        %1140 = vrot.lane.b32.xlu0 %v505, 120
        %v1141 = vpop.permute.xlu0 %1140
        %v1146 = vadd.f32 %v1066, %v1135
        %v1147 = vadd.f32 %v1067, %v1137
        %v1148 = vadd.f32 %v1068, %v1139
        %v1149 = vadd.f32 %v1069, %v1141
        %1150 = vrot.lane.b32.xlu0 %v526, 120
        %v1151 = vpop.permute.xlu0 %1150
        %1152 = vrot.lane.b32.xlu0 %v527, 120
        %v1153 = vpop.permute.xlu0 %1152
        %1154 = vrot.lane.b32.xlu0 %v528, 120
        %v1155 = vpop.permute.xlu0 %1154
        %1156 = vrot.lane.b32.xlu0 %v529, 120
        %v1157 = vpop.permute.xlu0 %1156
        %v1162 = vadd.f32 %v1082, %v1151
        %v1163 = vadd.f32 %v1083, %v1153
        %v1164 = vadd.f32 %v1084, %v1155
        %v1165 = vadd.f32 %v1085, %v1157
        %1166 = vrot.lane.b32.xlu0 %v550, 120
        %v1167 = vpop.permute.xlu0 %1166
        %1168 = vrot.lane.b32.xlu0 %v551, 120
        %v1169 = vpop.permute.xlu0 %1168
        %1170 = vrot.lane.b32.xlu0 %v552, 120
        %v1171 = vpop.permute.xlu0 %1170
        %1172 = vrot.lane.b32.xlu0 %v553, 120
        %v1173 = vpop.permute.xlu0 %1172
        %v1178 = vadd.f32 %v1098, %v1167
        %v1179 = vadd.f32 %v1099, %v1169
        %v1180 = vadd.f32 %v1100, %v1171
        %v1181 = vadd.f32 %v1101, %v1173
        %1182 = vrot.lane.b32.xlu0 %v574, 120
        %v1183 = vpop.permute.xlu0 %1182
        %1184 = vrot.lane.b32.xlu0 %v575, 120
        %v1185 = vpop.permute.xlu0 %1184
        %1186 = vrot.lane.b32.xlu0 %v576, 120
        %v1187 = vpop.permute.xlu0 %1186
        %1188 = vrot.lane.b32.xlu0 %v577, 120
        %v1189 = vpop.permute.xlu0 %1188
        %v1194 = vadd.f32 %v1114, %v1183
        %v1195 = vadd.f32 %v1115, %v1185
        %v1196 = vadd.f32 %v1116, %v1187
        %v1197 = vadd.f32 %v1117, %v1189
        %1198 = vrot.lane.b32.xlu0 %v358, 119
        %v1199 = vpop.permute.xlu0 %1198
        %1200 = vrot.lane.b32.xlu0 %v359, 119
        %v1201 = vpop.permute.xlu0 %1200
        %1202 = vrot.lane.b32.xlu0 %v360, 119
        %v1203 = vpop.permute.xlu0 %1202
        %1204 = vrot.lane.b32.xlu0 %v361, 119
        %v1205 = vpop.permute.xlu0 %1204
        %v1210 = vadd.f32 %v1130, %v1199
        %v1211 = vadd.f32 %v1131, %v1201
        %v1212 = vadd.f32 %v1132, %v1203
        %v1213 = vadd.f32 %v1133, %v1205
        %1214 = vrot.lane.b32.xlu0 %v382, 119
        %v1215 = vpop.permute.xlu0 %1214
        %1216 = vrot.lane.b32.xlu0 %v383, 119
        %v1217 = vpop.permute.xlu0 %1216
        %1218 = vrot.lane.b32.xlu0 %v384, 119
        %v1219 = vpop.permute.xlu0 %1218
        %1220 = vrot.lane.b32.xlu0 %v385, 119
        %v1221 = vpop.permute.xlu0 %1220
        %v1226 = vadd.f32 %v1146, %v1215
        %v1227 = vadd.f32 %v1147, %v1217
        %v1228 = vadd.f32 %v1148, %v1219
        %v1229 = vadd.f32 %v1149, %v1221
        %1230 = vrot.lane.b32.xlu0 %v406, 119
        %v1231 = vpop.permute.xlu0 %1230
        %1232 = vrot.lane.b32.xlu0 %v407, 119
        %v1233 = vpop.permute.xlu0 %1232
        %1234 = vrot.lane.b32.xlu0 %v408, 119
        %v1235 = vpop.permute.xlu0 %1234
        %1236 = vrot.lane.b32.xlu0 %v409, 119
        %v1237 = vpop.permute.xlu0 %1236
        %v1242 = vadd.f32 %v1162, %v1231
        %v1243 = vadd.f32 %v1163, %v1233
        %v1244 = vadd.f32 %v1164, %v1235
        %v1245 = vadd.f32 %v1165, %v1237
        %1246 = vrot.lane.b32.xlu0 %v430, 119
        %v1247 = vpop.permute.xlu0 %1246
        %1248 = vrot.lane.b32.xlu0 %v431, 119
        %v1249 = vpop.permute.xlu0 %1248
        %1250 = vrot.lane.b32.xlu0 %v432, 119
        %v1251 = vpop.permute.xlu0 %1250
        %1252 = vrot.lane.b32.xlu0 %v433, 119
        %v1253 = vpop.permute.xlu0 %1252
        %v1258 = vadd.f32 %v1178, %v1247
        %v1259 = vadd.f32 %v1179, %v1249
        %v1260 = vadd.f32 %v1180, %v1251
        %v1261 = vadd.f32 %v1181, %v1253
        %1262 = vrot.lane.b32.xlu0 %v454, 119
        %v1263 = vpop.permute.xlu0 %1262
        %1264 = vrot.lane.b32.xlu0 %v455, 119
        %v1265 = vpop.permute.xlu0 %1264
        %1266 = vrot.lane.b32.xlu0 %v456, 119
        %v1267 = vpop.permute.xlu0 %1266
        %1268 = vrot.lane.b32.xlu0 %v457, 119
        %v1269 = vpop.permute.xlu0 %1268
        %v1274 = vadd.f32 %v1194, %v1263
        %v1275 = vadd.f32 %v1195, %v1265
        %v1276 = vadd.f32 %v1196, %v1267
        %v1277 = vadd.f32 %v1197, %v1269
        %1282 = vrot.lane.b32.xlu0 %v326, 118
        %v1283 = vpop.permute.xlu0 %1282
        %1284 = vrot.lane.b32.xlu0 %v327, 118
        %v1285 = vpop.permute.xlu0 %1284
        %1286 = vrot.lane.b32.xlu0 %v328, 118
        %v1287 = vpop.permute.xlu0 %1286
        %1288 = vrot.lane.b32.xlu0 %v329, 118
        %v1289 = vpop.permute.xlu0 %1288
        %v1294 = vadd.f32 %v1210, %v1283
        %v1295 = vadd.f32 %v1211, %v1285
        %v1296 = vadd.f32 %v1212, %v1287
        %v1297 = vadd.f32 %v1213, %v1289
        %1302 = vrot.lane.b32.xlu0 %v330, 118
        %v1303 = vpop.permute.xlu0 %1302
        %1304 = vrot.lane.b32.xlu0 %v331, 118
        %v1305 = vpop.permute.xlu0 %1304
        %1306 = vrot.lane.b32.xlu0 %v332, 118
        %v1307 = vpop.permute.xlu0 %1306
        %1308 = vrot.lane.b32.xlu0 %v333, 118
        %v1309 = vpop.permute.xlu0 %1308
        %v1314 = vadd.f32 %v1226, %v1303
        %v1315 = vadd.f32 %v1227, %v1305
        %v1316 = vadd.f32 %v1228, %v1307
        %v1317 = vadd.f32 %v1229, %v1309
        %1322 = vrot.lane.b32.xlu0 %v338, 118
        %v1323 = vpop.permute.xlu0 %1322
        %1324 = vrot.lane.b32.xlu0 %v339, 118
        %v1325 = vpop.permute.xlu0 %1324
        %1326 = vrot.lane.b32.xlu0 %v340, 118
        %v1327 = vpop.permute.xlu0 %1326
        %1328 = vrot.lane.b32.xlu0 %v341, 118
        %v1329 = vpop.permute.xlu0 %1328
        %v1334 = vadd.f32 %v1242, %v1323
        %v1335 = vadd.f32 %v1243, %v1325
        %v1336 = vadd.f32 %v1244, %v1327
        %v1337 = vadd.f32 %v1245, %v1329
        %1342 = vrot.lane.b32.xlu0 %v346, 118
        %v1343 = vpop.permute.xlu0 %1342
        %1344 = vrot.lane.b32.xlu0 %v347, 118
        %v1345 = vpop.permute.xlu0 %1344
        %1346 = vrot.lane.b32.xlu0 %v348, 118
        %v1347 = vpop.permute.xlu0 %1346
        %1348 = vrot.lane.b32.xlu0 %v349, 118
        %v1349 = vpop.permute.xlu0 %1348
        %v1354 = vadd.f32 %v1258, %v1343
        %v1355 = vadd.f32 %v1259, %v1345
        %v1356 = vadd.f32 %v1260, %v1347
        %v1357 = vadd.f32 %v1261, %v1349
        %1362 = vrot.lane.b32.xlu0 %v354, 118
        %v1363 = vpop.permute.xlu0 %1362
        %1364 = vrot.lane.b32.xlu0 %v355, 118
        %v1365 = vpop.permute.xlu0 %1364
        %1366 = vrot.lane.b32.xlu0 %v356, 118
        %v1367 = vpop.permute.xlu0 %1366
        %1368 = vrot.lane.b32.xlu0 %v357, 118
        %v1369 = vpop.permute.xlu0 %1368
        %v1374 = vadd.f32 %v1274, %v1363
        %v1375 = vadd.f32 %v1275, %v1365
        %v1376 = vadd.f32 %v1276, %v1367
        %v1377 = vadd.f32 %v1277, %v1369
        %v1378 = vmul.f32 %v1294, 0.0010283802
        %v1379 = vmul.f32 %v1295, 0.0010283802
        %v1380 = vmul.f32 %v1314, 0.0010283802
        %v1381 = vmul.f32 %v1315, 0.0010283802
        %v1382 = vmul.f32 %v1334, 0.0010283802
        %v1383 = vmul.f32 %v1335, 0.0010283802
        %v1384 = vmul.f32 %v1354, 0.0010283802
        %v1385 = vmul.f32 %v1355, 0.0010283802
        %v1386 = vmul.f32 %v1374, 0.0010283802
        %v1387 = vmul.f32 %v1375, 0.0010283802
        %v1388 = vmul.f32 %v1294, 0.0075987587
        %v1389 = vmul.f32 %v1295, 0.0075987587
        %v1390 = vmul.f32 %v1296, 0.0075987587
        %vm1394 = vcmask 1046528
        %v1395 = vrot.slane %v1388, 1
        %v1396 = vrot.slane %v1389, 1
        %v1397 = vsel %vm1394, %v1395, %v1396
        %v1398 = vrot.slane %v1390, 1
        %v1399 = vsel %vm1394, %v1396, %v1398
        %v1402 = vadd.f32 %v1378, %v1397
        %v1403 = vadd.f32 %v1379, %v1399
        %v1404 = vmul.f32 %v1314, 0.0075987587
        %v1405 = vmul.f32 %v1315, 0.0075987587
        %v1406 = vmul.f32 %v1316, 0.0075987587
        %v1410 = vrot.slane %v1404, 1
        %v1411 = vrot.slane %v1405, 1
        %v1412 = vsel %vm1394, %v1410, %v1411
        %v1413 = vrot.slane %v1406, 1
        %v1414 = vsel %vm1394, %v1411, %v1413
        %v1417 = vadd.f32 %v1380, %v1412
        %v1418 = vadd.f32 %v1381, %v1414
        %v1419 = vmul.f32 %v1334, 0.0075987587
        %v1420 = vmul.f32 %v1335, 0.0075987587
        %v1421 = vmul.f32 %v1336, 0.0075987587
        %v1425 = vrot.slane %v1419, 1
        %v1426 = vrot.slane %v1420, 1
        %v1427 = vsel %vm1394, %v1425, %v1426
        %v1428 = vrot.slane %v1421, 1
        %v1429 = vsel %vm1394, %v1426, %v1428
        %v1432 = vadd.f32 %v1382, %v1427
        %v1433 = vadd.f32 %v1383, %v1429
        %v1434 = vmul.f32 %v1354, 0.0075987587
        %v1435 = vmul.f32 %v1355, 0.0075987587
        %v1436 = vmul.f32 %v1356, 0.0075987587
        %v1440 = vrot.slane %v1434, 1
        %v1441 = vrot.slane %v1435, 1
        %v1442 = vsel %vm1394, %v1440, %v1441
        %v1443 = vrot.slane %v1436, 1
        %v1444 = vsel %vm1394, %v1441, %v1443
        %v1447 = vadd.f32 %v1384, %v1442
        %v1448 = vadd.f32 %v1385, %v1444
        %v1449 = vmul.f32 %v1374, 0.0075987587
        %v1450 = vmul.f32 %v1375, 0.0075987587
        %v1451 = vmul.f32 %v1376, 0.0075987587
        %v1455 = vrot.slane %v1449, 1
        %v1456 = vrot.slane %v1450, 1
        %v1457 = vsel %vm1394, %v1455, %v1456
        %v1458 = vrot.slane %v1451, 1
        %v1459 = vsel %vm1394, %v1456, %v1458
        %v1462 = vadd.f32 %v1386, %v1457
        %v1463 = vadd.f32 %v1387, %v1459
        %v1464 = vmul.f32 %v1294, 0.036000773
        %v1465 = vmul.f32 %v1295, 0.036000773
        %v1466 = vmul.f32 %v1296, 0.036000773
        %vm1470 = vcmask 1045504
        %v1471 = vrot.slane %v1464, 2
        %v1472 = vrot.slane %v1465, 2
        %v1473 = vsel %vm1470, %v1471, %v1472
        %v1474 = vrot.slane %v1466, 2
        %v1475 = vsel %vm1470, %v1472, %v1474
        %v1478 = vadd.f32 %v1402, %v1473
        %v1479 = vadd.f32 %v1403, %v1475
        %v1480 = vmul.f32 %v1314, 0.036000773
        %v1481 = vmul.f32 %v1315, 0.036000773
        %v1482 = vmul.f32 %v1316, 0.036000773
        %v1486 = vrot.slane %v1480, 2
        %v1487 = vrot.slane %v1481, 2
        %v1488 = vsel %vm1470, %v1486, %v1487
        %v1489 = vrot.slane %v1482, 2
        %v1490 = vsel %vm1470, %v1487, %v1489
        %v1493 = vadd.f32 %v1417, %v1488
        %v1494 = vadd.f32 %v1418, %v1490
        %v1495 = vmul.f32 %v1334, 0.036000773
        %v1496 = vmul.f32 %v1335, 0.036000773
        %v1497 = vmul.f32 %v1336, 0.036000773
        %v1501 = vrot.slane %v1495, 2
        %v1502 = vrot.slane %v1496, 2
        %v1503 = vsel %vm1470, %v1501, %v1502
        %v1504 = vrot.slane %v1497, 2
        %v1505 = vsel %vm1470, %v1502, %v1504
        %v1508 = vadd.f32 %v1432, %v1503
        %v1509 = vadd.f32 %v1433, %v1505
        %v1510 = vmul.f32 %v1354, 0.036000773
        %v1511 = vmul.f32 %v1355, 0.036000773
        %v1512 = vmul.f32 %v1356, 0.036000773
        %v1516 = vrot.slane %v1510, 2
        %v1517 = vrot.slane %v1511, 2
        %v1518 = vsel %vm1470, %v1516, %v1517
        %v1519 = vrot.slane %v1512, 2
        %v1520 = vsel %vm1470, %v1517, %v1519
        %v1523 = vadd.f32 %v1447, %v1518
        %v1524 = vadd.f32 %v1448, %v1520
        %v1525 = vmul.f32 %v1374, 0.036000773
        %v1526 = vmul.f32 %v1375, 0.036000773
        %v1527 = vmul.f32 %v1376, 0.036000773
        %v1531 = vrot.slane %v1525, 2
        %v1532 = vrot.slane %v1526, 2
        %v1533 = vsel %vm1470, %v1531, %v1532
        %v1534 = vrot.slane %v1527, 2
        %v1535 = vsel %vm1470, %v1532, %v1534
        %v1538 = vadd.f32 %v1462, %v1533
        %v1539 = vadd.f32 %v1463, %v1535
        %v1540 = vmul.f32 %v1294, 0.109360695
        %v1541 = vmul.f32 %v1295, 0.109360695
        %v1542 = vmul.f32 %v1296, 0.109360695
        %vm1546 = vcmask 1044480
        %v1547 = vrot.slane %v1540, 3
        %v1548 = vrot.slane %v1541, 3
        %v1549 = vsel %vm1546, %v1547, %v1548
        %v1550 = vrot.slane %v1542, 3
        %v1551 = vsel %vm1546, %v1548, %v1550
        %v1554 = vadd.f32 %v1478, %v1549
        %v1555 = vadd.f32 %v1479, %v1551
        %v1556 = vmul.f32 %v1314, 0.109360695
        %v1557 = vmul.f32 %v1315, 0.109360695
        %v1558 = vmul.f32 %v1316, 0.109360695
        %v1562 = vrot.slane %v1556, 3
        %v1563 = vrot.slane %v1557, 3
        %v1564 = vsel %vm1546, %v1562, %v1563
        %v1565 = vrot.slane %v1558, 3
        %v1566 = vsel %vm1546, %v1563, %v1565
        %v1569 = vadd.f32 %v1493, %v1564
        %v1570 = vadd.f32 %v1494, %v1566
        %v1571 = vmul.f32 %v1334, 0.109360695
        %v1572 = vmul.f32 %v1335, 0.109360695
        %v1573 = vmul.f32 %v1336, 0.109360695
        %v1577 = vrot.slane %v1571, 3
        %v1578 = vrot.slane %v1572, 3
        %v1579 = vsel %vm1546, %v1577, %v1578
        %v1580 = vrot.slane %v1573, 3
        %v1581 = vsel %vm1546, %v1578, %v1580
        %v1584 = vadd.f32 %v1508, %v1579
        %v1585 = vadd.f32 %v1509, %v1581
        %v1586 = vmul.f32 %v1354, 0.109360695
        %v1587 = vmul.f32 %v1355, 0.109360695
        %v1588 = vmul.f32 %v1356, 0.109360695
        %v1592 = vrot.slane %v1586, 3
        %v1593 = vrot.slane %v1587, 3
        %v1594 = vsel %vm1546, %v1592, %v1593
        %v1595 = vrot.slane %v1588, 3
        %v1596 = vsel %vm1546, %v1593, %v1595
        %v1599 = vadd.f32 %v1523, %v1594
        %v1600 = vadd.f32 %v1524, %v1596
        %v1601 = vmul.f32 %v1374, 0.109360695
        %v1602 = vmul.f32 %v1375, 0.109360695
        %v1603 = vmul.f32 %v1376, 0.109360695
        %v1607 = vrot.slane %v1601, 3
        %v1608 = vrot.slane %v1602, 3
        %v1609 = vsel %vm1546, %v1607, %v1608
        %v1610 = vrot.slane %v1603, 3
        %v1611 = vsel %vm1546, %v1608, %v1610
        %v1614 = vadd.f32 %v1538, %v1609
        %v1615 = vadd.f32 %v1539, %v1611
        %v1616 = vmul.f32 %v1294, 0.21300554
        %v1617 = vmul.f32 %v1295, 0.21300554
        %v1618 = vmul.f32 %v1296, 0.21300554
        %vm1622 = vcmask 1043456
        %v1623 = vrot.slane %v1616, 4
        %v1624 = vrot.slane %v1617, 4
        %v1625 = vsel %vm1622, %v1623, %v1624
        %v1626 = vrot.slane %v1618, 4
        %v1627 = vsel %vm1622, %v1624, %v1626
        %v1630 = vadd.f32 %v1554, %v1625
        %v1631 = vadd.f32 %v1555, %v1627
        %v1632 = vmul.f32 %v1314, 0.21300554
        %v1633 = vmul.f32 %v1315, 0.21300554
        %v1634 = vmul.f32 %v1316, 0.21300554
        %v1638 = vrot.slane %v1632, 4
        %v1639 = vrot.slane %v1633, 4
        %v1640 = vsel %vm1622, %v1638, %v1639
        %v1641 = vrot.slane %v1634, 4
        %v1642 = vsel %vm1622, %v1639, %v1641
        %v1645 = vadd.f32 %v1569, %v1640
        %v1646 = vadd.f32 %v1570, %v1642
        %v1647 = vmul.f32 %v1334, 0.21300554
        %v1648 = vmul.f32 %v1335, 0.21300554
        %v1649 = vmul.f32 %v1336, 0.21300554
        %v1653 = vrot.slane %v1647, 4
        %v1654 = vrot.slane %v1648, 4
        %v1655 = vsel %vm1622, %v1653, %v1654
        %v1656 = vrot.slane %v1649, 4
        %v1657 = vsel %vm1622, %v1654, %v1656
        %v1660 = vadd.f32 %v1584, %v1655
        %v1661 = vadd.f32 %v1585, %v1657
        %v1662 = vmul.f32 %v1354, 0.21300554
        %v1663 = vmul.f32 %v1355, 0.21300554
        %v1664 = vmul.f32 %v1356, 0.21300554
        %v1668 = vrot.slane %v1662, 4
        %v1669 = vrot.slane %v1663, 4
        %v1670 = vsel %vm1622, %v1668, %v1669
        %v1671 = vrot.slane %v1664, 4
        %v1672 = vsel %vm1622, %v1669, %v1671
        %v1675 = vadd.f32 %v1599, %v1670
        %v1676 = vadd.f32 %v1600, %v1672
        %v1677 = vmul.f32 %v1374, 0.21300554
        %v1678 = vmul.f32 %v1375, 0.21300554
        %v1679 = vmul.f32 %v1376, 0.21300554
        %v1683 = vrot.slane %v1677, 4
        %v1684 = vrot.slane %v1678, 4
        %v1685 = vsel %vm1622, %v1683, %v1684
        %v1686 = vrot.slane %v1679, 4
        %v1687 = vsel %vm1622, %v1684, %v1686
        %v1690 = vadd.f32 %v1614, %v1685
        %v1691 = vadd.f32 %v1615, %v1687
        %v1692 = vmul.f32 %v1294, 0.26601174
        %v1693 = vmul.f32 %v1295, 0.26601174
        %v1694 = vmul.f32 %v1296, 0.26601174
        %vm1698 = vcmask 1042432
        %v1699 = vrot.slane %v1692, 5
        %v1700 = vrot.slane %v1693, 5
        %v1701 = vsel %vm1698, %v1699, %v1700
        %v1702 = vrot.slane %v1694, 5
        %v1703 = vsel %vm1698, %v1700, %v1702
        %v1706 = vadd.f32 %v1630, %v1701
        %v1707 = vadd.f32 %v1631, %v1703
        %v1708 = vmul.f32 %v1314, 0.26601174
        %v1709 = vmul.f32 %v1315, 0.26601174
        %v1710 = vmul.f32 %v1316, 0.26601174
        %v1714 = vrot.slane %v1708, 5
        %v1715 = vrot.slane %v1709, 5
        %v1716 = vsel %vm1698, %v1714, %v1715
        %v1717 = vrot.slane %v1710, 5
        %v1718 = vsel %vm1698, %v1715, %v1717
        %v1721 = vadd.f32 %v1645, %v1716
        %v1722 = vadd.f32 %v1646, %v1718
        %v1723 = vmul.f32 %v1334, 0.26601174
        %v1724 = vmul.f32 %v1335, 0.26601174
        %v1725 = vmul.f32 %v1336, 0.26601174
        %v1729 = vrot.slane %v1723, 5
        %v1730 = vrot.slane %v1724, 5
        %v1731 = vsel %vm1698, %v1729, %v1730
        %v1732 = vrot.slane %v1725, 5
        %v1733 = vsel %vm1698, %v1730, %v1732
        %v1736 = vadd.f32 %v1660, %v1731
        %v1737 = vadd.f32 %v1661, %v1733
        %v1738 = vmul.f32 %v1354, 0.26601174
        %v1739 = vmul.f32 %v1355, 0.26601174
        %v1740 = vmul.f32 %v1356, 0.26601174
        %v1744 = vrot.slane %v1738, 5
        %v1745 = vrot.slane %v1739, 5
        %v1746 = vsel %vm1698, %v1744, %v1745
        %v1747 = vrot.slane %v1740, 5
        %v1748 = vsel %vm1698, %v1745, %v1747
        %v1751 = vadd.f32 %v1675, %v1746
        %v1752 = vadd.f32 %v1676, %v1748
        %v1753 = vmul.f32 %v1374, 0.26601174
        %v1754 = vmul.f32 %v1375, 0.26601174
        %v1755 = vmul.f32 %v1376, 0.26601174
        %v1759 = vrot.slane %v1753, 5
        %v1760 = vrot.slane %v1754, 5
        %v1761 = vsel %vm1698, %v1759, %v1760
        %v1762 = vrot.slane %v1755, 5
        %v1763 = vsel %vm1698, %v1760, %v1762
        %v1766 = vadd.f32 %v1690, %v1761
        %v1767 = vadd.f32 %v1691, %v1763
        %vm1768 = vcmask 1041408
        %v1769 = vrot.slane %v1616, 6
        %v1770 = vrot.slane %v1617, 6
        %v1771 = vsel %vm1768, %v1769, %v1770
        %v1772 = vrot.slane %v1618, 6
        %v1773 = vsel %vm1768, %v1770, %v1772
        %v1776 = vadd.f32 %v1706, %v1771
        %v1777 = vadd.f32 %v1707, %v1773
        %v1778 = vrot.slane %v1632, 6
        %v1779 = vrot.slane %v1633, 6
        %v1780 = vsel %vm1768, %v1778, %v1779
        %v1781 = vrot.slane %v1634, 6
        %v1782 = vsel %vm1768, %v1779, %v1781
        %v1785 = vadd.f32 %v1721, %v1780
        %v1786 = vadd.f32 %v1722, %v1782
        %v1787 = vrot.slane %v1647, 6
        %v1788 = vrot.slane %v1648, 6
        %v1789 = vsel %vm1768, %v1787, %v1788
        %v1790 = vrot.slane %v1649, 6
        %v1791 = vsel %vm1768, %v1788, %v1790
        %v1794 = vadd.f32 %v1736, %v1789
        %v1795 = vadd.f32 %v1737, %v1791
        %v1796 = vrot.slane %v1662, 6
        %v1797 = vrot.slane %v1663, 6
        %v1798 = vsel %vm1768, %v1796, %v1797
        %v1799 = vrot.slane %v1664, 6
        %v1800 = vsel %vm1768, %v1797, %v1799
        %v1803 = vadd.f32 %v1751, %v1798
        %v1804 = vadd.f32 %v1752, %v1800
        %v1805 = vrot.slane %v1677, 6
        %v1806 = vrot.slane %v1678, 6
        %v1807 = vsel %vm1768, %v1805, %v1806
        %v1808 = vrot.slane %v1679, 6
        %v1809 = vsel %vm1768, %v1806, %v1808
        %v1812 = vadd.f32 %v1766, %v1807
        %v1813 = vadd.f32 %v1767, %v1809
        %vm1814 = vcmask 1040384
        %v1815 = vrot.slane %v1540, 7
        %v1816 = vrot.slane %v1541, 7
        %v1817 = vsel %vm1814, %v1815, %v1816
        %v1818 = vrot.slane %v1542, 7
        %v1819 = vsel %vm1814, %v1816, %v1818
        %v1822 = vadd.f32 %v1776, %v1817
        %v1823 = vadd.f32 %v1777, %v1819
        %v1824 = vrot.slane %v1556, 7
        %v1825 = vrot.slane %v1557, 7
        %v1826 = vsel %vm1814, %v1824, %v1825
        %v1827 = vrot.slane %v1558, 7
        %v1828 = vsel %vm1814, %v1825, %v1827
        %v1831 = vadd.f32 %v1785, %v1826
        %v1832 = vadd.f32 %v1786, %v1828
        %v1833 = vrot.slane %v1571, 7
        %v1834 = vrot.slane %v1572, 7
        %v1835 = vsel %vm1814, %v1833, %v1834
        %v1836 = vrot.slane %v1573, 7
        %v1837 = vsel %vm1814, %v1834, %v1836
        %v1840 = vadd.f32 %v1794, %v1835
        %v1841 = vadd.f32 %v1795, %v1837
        %v1842 = vrot.slane %v1586, 7
        %v1843 = vrot.slane %v1587, 7
        %v1844 = vsel %vm1814, %v1842, %v1843
        %v1845 = vrot.slane %v1588, 7
        %v1846 = vsel %vm1814, %v1843, %v1845
        %v1849 = vadd.f32 %v1803, %v1844
        %v1850 = vadd.f32 %v1804, %v1846
        %v1851 = vrot.slane %v1601, 7
        %v1852 = vrot.slane %v1602, 7
        %v1853 = vsel %vm1814, %v1851, %v1852
        %v1854 = vrot.slane %v1603, 7
        %v1855 = vsel %vm1814, %v1852, %v1854
        %v1858 = vadd.f32 %v1812, %v1853
        %v1859 = vadd.f32 %v1813, %v1855
        %v1860 = vadd.f32 %v1822, %v1465
        %v1861 = vadd.f32 %v1823, %v1466
        %v1862 = vadd.f32 %v1831, %v1481
        %v1863 = vadd.f32 %v1832, %v1482
        %v1864 = vadd.f32 %v1840, %v1496
        %v1865 = vadd.f32 %v1841, %v1497
        %v1866 = vadd.f32 %v1849, %v1511
        %v1867 = vadd.f32 %v1850, %v1512
        %v1868 = vadd.f32 %v1858, %v1526
        %v1869 = vadd.f32 %v1859, %v1527
        %v1870 = vmul.f32 %v1297, 0.0075987587
        %v1872 = vrot.slane %v1870, 1
        %v1873 = vsel %vm1394, %v1398, %v1872
        %v1875 = vadd.f32 %v1860, %v1399
        %v1876 = vadd.f32 %v1861, %v1873
        %v1877 = vmul.f32 %v1317, 0.0075987587
        %v1879 = vrot.slane %v1877, 1
        %v1880 = vsel %vm1394, %v1413, %v1879
        %v1882 = vadd.f32 %v1862, %v1414
        %v1883 = vadd.f32 %v1863, %v1880
        %v1884 = vmul.f32 %v1337, 0.0075987587
        %v1886 = vrot.slane %v1884, 1
        %v1887 = vsel %vm1394, %v1428, %v1886
        %v1889 = vadd.f32 %v1864, %v1429
        %v1890 = vadd.f32 %v1865, %v1887
        %v1891 = vmul.f32 %v1357, 0.0075987587
        %v1893 = vrot.slane %v1891, 1
        %v1894 = vsel %vm1394, %v1443, %v1893
        %v1896 = vadd.f32 %v1866, %v1444
        %v1897 = vadd.f32 %v1867, %v1894
        %v1898 = vmul.f32 %v1377, 0.0075987587
        %v1900 = vrot.slane %v1898, 1
        %v1901 = vsel %vm1394, %v1458, %v1900
        %v1903 = vadd.f32 %v1868, %v1459
        %v1904 = vadd.f32 %v1869, %v1901
        %v1905 = vmul.f32 %v1296, 0.0010283802
        %v1906 = vmul.f32 %v1297, 0.0010283802
        %v1910 = vrot.slane %v1379, 2
        %v1911 = vrot.slane %v1905, 2
        %v1912 = vsel %vm1470, %v1910, %v1911
        %v1913 = vrot.slane %v1906, 2
        %v1914 = vsel %vm1470, %v1911, %v1913
        %v1917 = vadd.f32 %v1875, %v1912
        %v1918 = vadd.f32 %v1876, %v1914
        %v1919 = vmul.f32 %v1316, 0.0010283802
        %v1920 = vmul.f32 %v1317, 0.0010283802
        %v1924 = vrot.slane %v1381, 2
        %v1925 = vrot.slane %v1919, 2
        %v1926 = vsel %vm1470, %v1924, %v1925
        %v1927 = vrot.slane %v1920, 2
        %v1928 = vsel %vm1470, %v1925, %v1927
        %v1931 = vadd.f32 %v1882, %v1926
        %v1932 = vadd.f32 %v1883, %v1928
        %v1933 = vmul.f32 %v1336, 0.0010283802
        %v1934 = vmul.f32 %v1337, 0.0010283802
        %v1938 = vrot.slane %v1383, 2
        %v1939 = vrot.slane %v1933, 2
        %v1940 = vsel %vm1470, %v1938, %v1939
        %v1941 = vrot.slane %v1934, 2
        %v1942 = vsel %vm1470, %v1939, %v1941
        %v1945 = vadd.f32 %v1889, %v1940
        %v1946 = vadd.f32 %v1890, %v1942
        %v1947 = vmul.f32 %v1356, 0.0010283802
        %v1948 = vmul.f32 %v1357, 0.0010283802
        %v1952 = vrot.slane %v1385, 2
        %v1953 = vrot.slane %v1947, 2
        %v1954 = vsel %vm1470, %v1952, %v1953
        %v1955 = vrot.slane %v1948, 2
        %v1956 = vsel %vm1470, %v1953, %v1955
        %v1959 = vadd.f32 %v1896, %v1954
        %v1960 = vadd.f32 %v1897, %v1956
        %v1961 = vmul.f32 %v1376, 0.0010283802
        %v1962 = vmul.f32 %v1377, 0.0010283802
        %v1966 = vrot.slane %v1387, 2
        %v1967 = vrot.slane %v1961, 2
        %v1968 = vsel %vm1470, %v1966, %v1967
        %v1969 = vrot.slane %v1962, 2
        %v1970 = vsel %vm1470, %v1967, %v1969
        %v1973 = vadd.f32 %v1903, %v1968
        %v1974 = vadd.f32 %v1904, %v1970
        %v1975 = vmul.f32 %v1917, %v1917
        %v1976 = vmul.f32 %v1918, %v1918
        %v1977 = vmul.f32 %v1931, %v1931
        %v1978 = vmul.f32 %v1932, %v1932
        %v1979 = vmul.f32 %v1917, %v1931
        %v1980 = vmul.f32 %v1918, %v1932
        %v1981 = vsub.f32 %v1945, %v1975
        %v1982 = vsub.f32 %v1946, %v1976
        %v1983 = vsub.f32 %v1959, %v1977
        %v1984 = vsub.f32 %v1960, %v1978
        %v1985 = vsub.f32 %v1973, %v1979
        %v1986 = vsub.f32 %v1974, %v1980
        %v1987 = vmul.f32 %v1979, 2.0
        %v1988 = vmul.f32 %v1980, 2.0
        %v1989 = vadd.f32 %v1987, 0.0001
        %v1990 = vadd.f32 %v1988, 0.0001
        %v1991 = vmul.f32 %v1985, 2.0
        %v1992 = vmul.f32 %v1986, 2.0
        %v1993 = vadd.f32 %v1991, 0.0009
        %v1994 = vadd.f32 %v1992, 0.0009
        %v1995 = vmul.f32 %v1989, %v1993
        %v1996 = vmul.f32 %v1990, %v1994
        %v1997 = vadd.f32 %v1975, %v1977
        %v1998 = vadd.f32 %v1976, %v1978
        %v1999 = vadd.f32 %v1997, 0.0001
        %v2000 = vadd.f32 %v1998, 0.0001
        %v2001 = vadd.f32 %v1981, %v1983
        %v2002 = vadd.f32 %v1982, %v1984
        %v2003 = vadd.f32 %v2001, 0.0009
        %v2004 = vadd.f32 %v2002, 0.0009
        %v2005 = vmul.f32 %v1999, %v2003
        %v2006 = vmul.f32 %v2000, %v2004
        %v2007 = vrcp.pop %v2005
        %v2008 = vrcp.pop %v2006
        %v2009 = vmul.f32 %v1995, %v2007
        %v2010 = vmul.f32 %v1996, %v2008
        %v2011 = vlaneseq
        %v2012 = vand.u32 %v2011, 127
        %vm2013 = vcmp.lt.s32.totalorder %v2012, 16
        %vm2014 = vcmp.ge.s32.totalorder %v2012, 26
        %vm2015 = vcmp.lt.s32.totalorder %v2012, 42
        %vm2016 = vmand %vm2014, %vm2015
        %vm2017 = vmor %vm2013, %vm2016
        %vm2018 = vcmp.ge.s32.totalorder %v2012, 52
        %vm2019 = vcmp.lt.s32.totalorder %v2012, 68
        %vm2020 = vmand %vm2018, %vm2019
        %vm2021 = vmor %vm2017, %vm2020
        %vm2022 = vcmp.ge.s32.totalorder %v2012, 78
        %vm2023 = vcmp.lt.s32.totalorder %v2012, 94
        %vm2024 = vmand %vm2022, %vm2023
        %vm2025 = vmor %vm2021, %vm2024
        %v2026 = vsel %vm2025, %v2009, 0.0
        %v2027 = vsel %vm2025, %v2010, 0.0
        %vm2028 = vcmask 850944
        %v2029 = vsel %vm2028, %v2026, 0.0
        %v2030 = vsel %vm2028, %v2027, 0.0
        %v2031 = vadd.f32 %v2029, %v2030
        %2032 = vadd.xlane.f32.xlu0 %v2031
        %v2033 = vpop.xlane.xlu0 %2032
        %v2034 = vrot.slane %v2033, 4
        %v2035 = vadd.f32 %v2033, %v2034
        %v2036 = vrot.slane %v2035, 2
        %v2037 = vadd.f32 %v2035, %v2036
        %v2038 = vrot.slane %v2037, 1
        %v2039 = vadd.f32 %v2037, %v2038
        %s2040 = vtos %v2039
        %v2041 = vstv %s2040
        %vm2042 = vcmask 0
        %2043 = vst.msk [vmem:[%s203] sm:$0x1] %vm2042, %v2041
        %p2044 = scmp.lt.s32.totalorder %s19, 1
        %s2045 = scalar_select %p2044, %s19, 1
        %s2046 = scalar_lea.vmem %s2, %s2045
        // Predicated region
        $region37: #{tpu_custom_call.1} parent=27 // pred_check
          %p2047 = pneg %p89
        $region38: #{tpu_custom_call.1} parent=27 // pred_check_branch
          %2049 = sbr.rel (%p2047) target = $region40
        $region39: #{tpu_custom_call.1} parent=27 // pred_region
          _
        $region40: #{tpu_custom_call.1} parent=27 // pred_fallthru
          _
      $region28: #{tpu_custom_call.1} parent=5 // pred_fallthru
        _
      %p2050 = scmp.le.s32.totalorder 2, %s14
      // Predicated region
      $region41: #{tpu_custom_call.1} parent=5 // pred_check
        %p2051 = pneg %p2050
      $region42: #{tpu_custom_call.1} parent=5 // pred_check_branch
        %2053 = sbr.rel (%p2051) target = $region44
      $region43: #{tpu_custom_call.1} parent=5 // pred_region
        %s2054 = ssub.s32 %s14, 2
        // Predicated region
        $region45: #{tpu_custom_call.1} parent=43 // pred_check
          %p2055 = pneg %p95
        $region46: #{tpu_custom_call.1} parent=43 // pred_check_branch
          %2057 = sbr.rel (%p2055) target = $region48
        $region47: #{tpu_custom_call.1} parent=43 // pred_region
          %p2058 = scmp.lt.s32.totalorder %s20, 1
          %s2059 = scalar_select %p2058, %s20, 1
          %s2060 = scalar_lea.vmem %s2, %s2059
        $region48: #{tpu_custom_call.1} parent=43 // pred_fallthru
          _
      $region44: #{tpu_custom_call.1} parent=5 // pred_fallthru
        _
    $region6: #{tpu_custom_call.1} parent=1 // loop_footer
      %s18 = sadd.s32 1, %s14
    $region7: #{tpu_custom_call.1} parent=1 // loop_footer_branch
      %13 = sbr.rel target = $region3
    $region8: #{tpu_custom_call.1} parent=1 // loop_exit
      _
    %2061 = vsyncpa [#allocation5], 1
    %s2062 = scalar_lea.sflag [#allocation5], 1
    %2063 = vsyncpa %s2062, 1
    %2064 = vsyncpa [#allocation7], 1
    %s2065 = scalar_lea.sflag [#allocation7], 1
    %2066 = vsyncpa %s2065, 1

</llo_original>
